<compile_context>
chip_gen: v7x
topology: tpu7x:2x2x1
jax: 0.10.0
libtpu: 0.0.40
codegen_flags: <defaults>
</compile_context>

<pallas_src>
import functools

import jax
import jax.numpy as jnp
import numpy as np
from jax.experimental import pallas as pl
from jax.experimental.pallas import tpu as pltpu


def decoder_kernel(
    x_ref,       # (Bt, T*E)   encoded sequence tile, lane-dense (flattened on host)
    w1xbd_ref,   # (T*E, T*E)  blockdiag(W1_x): hoisted attention projection of X
    w1d_ref,     # (D, T*E)    W1_d tiled along T (replaces per-step concat)
    w1c_ref,     # (D, T*E)    W1_c tiled along T
    b1_ref,      # (1, T*E)    b1 tiled along T (f32)
    w2bd_ref,    # (T*E, T)    blockdiag(W2): second attn linear as one matmul
    r_ref,       # (T, T*E)    0/1 expansion matrix (softmax weights -> lane-dense)
    s_ref,       # (T*E, E)    0/1 segment-sum matrix (context reduction over T)
    wgc_ref,     # (E, 4D)     fused fc->LSTM input weights (Wfc @ Wih^T), f32
    wgd_ref,     # (D, 4D)     LSTM recurrent weights (Whh^T), f32
    bg_ref,      # (1, 4D)     fused gate bias, f32
    wfd_ref,     # (D, C)      fc_final rows for d_n, f32
    wfc_ref,     # (E, C)      fc_final rows for context, f32
    bf_ref,      # (1, C)      f32
    out_ref,     # (Bt, C)
    xw_ref,      # VMEM scratch (Bt, T*E) f32: hoisted X-projection (+ b1)
    *,
    ew_dtype,    # dtype of the big tanh (bf16 on v6e/v7x, f32 on v5e)
):
    Bt, TE = x_ref.shape
    T = r_ref.shape[0]
    E = TE // T
    D = wgd_ref.shape[0]
    cdtype = w1xbd_ref.dtype            # matmul-operand dtype (f32 or bf16)
    f32 = jnp.float32

    # Hoisted, time-invariant: lane-dense attention projection of X plus b1 (once
    # per batch tile), kept in an explicit VMEM scratch to stay off the vregs.
    xw_ref[...] = (jnp.dot(x_ref[...], w1xbd_ref[...], preferred_element_type=f32)
                   + b1_ref[...])

    w1d = w1d_ref[...]
    w1c = w1c_ref[...]
    w2bd = w2bd_ref[...]
    r_mat = r_ref[...]
    s_mat = s_ref[...]
    wgc = wgc_ref[...]
    wgd = wgd_ref[...]
    bg = bg_ref[...]

    def step(t, carry):
        d_n, c_n, _ = carry             # (Bt, D), (Bt, D), (Bt, E)  all f32

        # attn_layer(cat(d, c, X)): split weights -> two MXU accumulates, no concat.
        preact = (xw_ref[...]
                  + jnp.dot(d_n.astype(cdtype), w1d, preferred_element_type=f32)
                  + jnp.dot(c_n.astype(cdtype), w1c, preferred_element_type=f32))
        h = jnp.tanh(preact.astype(ew_dtype)).astype(cdtype)   # lane-dense EUP

        # Second attn linear as one matmul against blockdiag(W2).
        # (b2 is a constant shift of the scores -> softmax no-op, dropped on host.)
        scores = jnp.dot(h, w2bd, preferred_element_type=f32)  # (Bt, T)
        m = jnp.max(scores, axis=1, keepdims=True)
        e = jnp.exp(scores - m)                                 # (Bt, T)
        inv_denom = pl.reciprocal(jnp.sum(e, axis=1, keepdims=True), approx=True)

        # context = softmax(scores) @_batched X: expand the unnormalized weights
        # to lane-dense (0/1 matmul), multiply, segment-sum over T (0/1 matmul),
        # then normalize once per row with the reciprocal.
        e_exp = jnp.dot(e, r_mat, preferred_element_type=f32)   # (Bt, T*E)
        ctx_un = jnp.dot(e_exp * x_ref[...].astype(f32), s_mat,
                         preferred_element_type=f32)            # (Bt, E)
        context = ctx_un * inv_denom

        # fused fc -> single-step LSTM (gate order i, f, g, o); f32 weights/carries.
        gates = (jnp.dot(context, wgc, preferred_element_type=f32)
                 + jnp.dot(d_n, wgd, preferred_element_type=f32) + bg)
        i_g = jax.nn.sigmoid(gates[:, 0:D])
        f_g = jax.nn.sigmoid(gates[:, D:2 * D])
        g_g = jnp.tanh(gates[:, 2 * D:3 * D])
        o_g = jax.nn.sigmoid(gates[:, 3 * D:4 * D])
        c_new = f_g * c_n + i_g * g_g
        d_new = o_g * jnp.tanh(c_new)
        return (d_new, c_new, context)

    d0 = jnp.zeros((Bt, D), f32)
    c0 = jnp.zeros((Bt, D), f32)
    ctx0 = jnp.zeros((Bt, E), f32)
    # The d/c carry serializes the steps anyway; keep the loop rolled to limit
    # vreg pressure at large batch tiles (unroll only saves loop overhead here).
    d_n, c_n, context = jax.lax.fori_loop(0, T, step, (d0, c0, ctx0))

    # y_pred = fc_final(cat(d_n, context)) -- split weights, no concat.
    # NOTE: (Bt, C=4) is a masked partial store; negligible at this output volume.
    out_ref[...] = (jnp.dot(d_n, wfd_ref[...], preferred_element_type=f32)
                    + jnp.dot(context, wfc_ref[...], preferred_element_type=f32)
                    + bf_ref[...])


def _pick_b_tile(B, max_tile=256):
    """Largest multiple-of-8 divisor of B that is <= max_tile, preferring a grid
    with >= 2 programs so v7x's second TensorCore gets work.
    (On v5e, max_tile=128 is a good choice.)"""
    divisors = [t for t in range(min(B, max_tile), 0, -1) if B % t == 0]
    for t in divisors:
        if t % 8 == 0 and B // t >= 2:
            return t
    for t in divisors:
        if t % 8 == 0:
            return t
    return B            # tiny/odd batch: one program, full-array block (layout-safe)


def decoder_pallas(X, params, *, use_bf16=True, bf16_elementwise=None,
                   b_tile=None, interpret=False):
    """DA-RNN Decoder forward.  X: (B, T, E) f32.  Returns (B, C) f32."""
    (W1, b1, W2, b2, Wfc, bfc, Wih_t, Whh_t, b_lstm, Wf, bf,
     T, D, E, C) = params
    B = X.shape[0]
    TE = T * E
    f32 = jnp.float32
    if bf16_elementwise is None:
        bf16_elementwise = use_bf16       # set False on v5e (no bf16 VPU/EUP)
    mm_dtype = jnp.bfloat16 if use_bf16 else f32
    ew_dtype = jnp.bfloat16 if bf16_elementwise else f32

    # ---- exact host-side weight pre-fusion (linear-algebra identities) -----
    eye_t = jnp.eye(T, dtype=f32)
    W1d, W1c, W1x = W1[:D], W1[D:2 * D], W1[2 * D:]
    w1x_bd = jnp.kron(eye_t, W1x)                      # (T*E, T*E) blockdiag
    w1d_t = jnp.tile(W1d, (1, T))                      # (D, T*E)
    w1c_t = jnp.tile(W1c, (1, T))
    b1_t = jnp.tile(b1.reshape(1, E), (1, T))          # (1, T*E)
    w2_bd = jnp.kron(eye_t, W2)                        # (T*E, T); b2 dropped (softmax no-op)
    r_mat = jnp.kron(eye_t, jnp.ones((1, E), f32))     # (T, T*E)  0/1 expansion
    s_mat = jnp.kron(jnp.ones((T, 1), f32), jnp.eye(E, dtype=f32))  # (T*E, E) 0/1 segment sum
    # fc -> LSTM input: (ctx@Wfc + bfc)@Wih == ctx@(Wfc@Wih) + bfc*Wih
    wg_ctx = Wfc @ Wih_t                               # (E, 4D)
    wg_d = Whh_t                                       # (D, 4D)
    bg = b_lstm.reshape(1, 4 * D) + bfc.reshape(1, 1) * Wih_t
    wf_d, wf_ctx = Wf[:D], Wf[D:]

    # bf16 storage only for the large attention-path operands; small recurrence /
    # output weights and the 0/1 selection matrices stay f32 (accuracy, tiny size).
    args = (
        X.reshape(B, TE).astype(mm_dtype),             # lane-dense X (free reshape)
        w1x_bd.astype(mm_dtype), w1d_t.astype(mm_dtype), w1c_t.astype(mm_dtype),
        b1_t.astype(f32),
        w2_bd.astype(mm_dtype),
        r_mat, s_mat,
        wg_ctx.astype(f32), wg_d.astype(f32), bg.astype(f32),
        wf_d.astype(f32), wf_ctx.astype(f32), bf.reshape(1, C).astype(f32),
    )

    if b_tile is None:
        b_tile = _pick_b_tile(B)
    grid = (B // b_tile,)

    x_spec = pl.BlockSpec((b_tile, TE), lambda i: (i, 0))
    w_spec = lambda a: pl.BlockSpec(a.shape, lambda i: (0, 0))
    in_specs = [x_spec] + [w_spec(a) for a in args[1:]]
    out_spec = pl.BlockSpec((b_tile, C), lambda i: (i, 0))

    # Rough cost hint so XLA schedules neighbouring ops sensibly.
    bytes_in = sum(int(np.prod(a.shape)) * a.dtype.itemsize for a in args)
    flops = B * (2 * TE * TE
                 + T * (4 * D * TE + 4 * T * TE + 2 * TE * E + 8 * (E + D) * D)
                 + 2 * (D + E) * C)
    transc = B * T * (TE + T + 5 * D)
    cost = pl.CostEstimate(flops=int(flops), transcendentals=int(transc),
                           bytes_accessed=int(bytes_in + B * C * 4))

    return pl.pallas_call(
        functools.partial(decoder_kernel, ew_dtype=ew_dtype),
        out_shape=jax.ShapeDtypeStruct((B, C), f32),
        grid=grid,
        in_specs=in_specs,
        out_specs=out_spec,
        scratch_shapes=[pltpu.VMEM((b_tile, TE), f32)],
        compiler_params=pltpu.CompilerParams(
            dimension_semantics=("parallel",),
            # ~1.5 MiB live at b_tile=256 (X tile x2, xw scratch, resident
            # weights); explicit limit keeps it safe on v7x's 64 MiB VMEM too.
            vmem_limit_bytes=32 * 1024 * 1024),
        cost_estimate=cost,
        interpret=interpret,
    )(*args)


def decoder_ref(X, params):
    """Pure-JAX mirror of the PyTorch forward (un-fused concat formulation)."""
    (W1, b1, W2, b2, Wfc, bfc, Wih_t, Whh_t, b_lstm, Wf, bf,
     T, D, E, C) = params
    B = X.shape[0]
    d = jnp.zeros((B, D), jnp.float32)
    c = jnp.zeros((B, D), jnp.float32)
    context = jnp.zeros((B, E), jnp.float32)
    for _ in range(T):
        d_rep = jnp.broadcast_to(d[:, None, :], (B, T, D))
        c_rep = jnp.broadcast_to(c[:, None, :], (B, T, D))
        x = jnp.concatenate([d_rep, c_rep, X], axis=2).reshape(B * T, 2 * D + E)
        scores = (jnp.tanh(x @ W1 + b1) @ W2 + b2).reshape(B, T)
        beta = jax.nn.softmax(scores, axis=1)
        context = jnp.einsum("bt,bte->be", beta, X)
        y_tilde = context @ Wfc + bfc
        gates = y_tilde @ Wih_t + d @ Whh_t + b_lstm
        i_g = jax.nn.sigmoid(gates[:, :D])
        f_g = jax.nn.sigmoid(gates[:, D:2 * D])
        g_g = jnp.tanh(gates[:, 2 * D:3 * D])
        o_g = jax.nn.sigmoid(gates[:, 3 * D:])
        c = f_g * c + i_g * g_g
        d = o_g * jnp.tanh(c)
    return jnp.concatenate([d, context], axis=1) @ Wf + bf


if __name__ == "__main__":
    # Small shapes consistent with the module's forward (exercises a 2-program grid):
    B, T, E, D, C = 64, 8, 32, 32, 4   # batch, Time_length, enc_hidden, dec_hidden, num_class

    key = jax.random.PRNGKey(0)
    ks = jax.random.split(key, 12)

    def init(k, shape, fan_in):
        return (jax.random.normal(k, shape, jnp.float32) / np.sqrt(fan_in)).astype(jnp.float32)

    X = jax.random.normal(ks[0], (B, T, E), jnp.float32)

    W1 = init(ks[1], (2 * D + E, E), 2 * D + E)        # attn Linear 1 (stored (in, out))
    b1 = init(ks[2], (E,), 2 * D + E)
    W2 = init(ks[3], (E, 1), E)                        # attn Linear 2
    b2 = init(ks[4], (1,), E)
    Wfc = jax.random.normal(ks[5], (E, 1), jnp.float32)    # fc.weight.data.normal_()
    bfc = init(ks[6], (1,), E)
    Wih_t = init(ks[7], (1, 4 * D), D)                 # LSTM weight_ih^T (input_size=1)
    Whh_t = init(ks[8], (D, 4 * D), D)                 # LSTM weight_hh^T
    b_lstm = init(ks[9], (4 * D,), D) + init(ks[10], (4 * D,), D)   # b_ih + b_hh
    Wf = init(ks[11], (D + E, C), D + E)               # fc_final
    bf = jnp.zeros((C,), jnp.float32)

    params = (W1, b1, W2, b2, Wfc, bfc, Wih_t, Whh_t, b_lstm, Wf, bf, T, D, E, C)

    y_ref = decoder_ref(X, params)

    # f32 path: tight numerical check against the pure-JAX mirror
    # (5e-3 headroom covers the approx softmax reciprocal).
    y_f32 = decoder_pallas(X, params, use_bf16=False)
    jax.block_until_ready(y_f32)
    np.testing.assert_allclose(np.asarray(y_f32), np.asarray(y_ref),
                               rtol=5e-3, atol=5e-3)

    # Default bf16-storage / bf16-tanh path (v6e/v7x): looser tolerance because X,
    # the attention weights and the big tanh are bf16-rounded and the rounding
    # compounds through the T=8 LSTM recurrence (carries/accumulation stay f32).
    y_bf16 = decoder_pallas(X, params, use_bf16=True)
    jax.block_until_ready(y_bf16)
    np.testing.assert_allclose(np.asarray(y_bf16), np.asarray(y_ref),
                               rtol=8e-2, atol=8e-2)

    assert y_f32.shape == (B, C) and y_bf16.shape == (B, C)
    print("KERNEL_OK")
</pallas_src>

<mosaic_0001>
module attributes {stable_mosaic.version = 11 : i64} {
  func.func @decoder_kernel(%arg0: i32, %arg1: memref<32x256xf32, #tpu.memory_space<vmem>>, %arg2: memref<256x256xf32, #tpu.memory_space<vmem>>, %arg3: memref<32x256xf32, #tpu.memory_space<vmem>>, %arg4: memref<32x256xf32, #tpu.memory_space<vmem>>, %arg5: memref<1x256xf32, #tpu.memory_space<vmem>>, %arg6: memref<256x8xf32, #tpu.memory_space<vmem>>, %arg7: memref<8x256xf32, #tpu.memory_space<vmem>>, %arg8: memref<256x32xf32, #tpu.memory_space<vmem>>, %arg9: memref<32x128xf32, #tpu.memory_space<vmem>>, %arg10: memref<32x128xf32, #tpu.memory_space<vmem>>, %arg11: memref<1x128xf32, #tpu.memory_space<vmem>>, %arg12: memref<32x4xf32, #tpu.memory_space<vmem>>, %arg13: memref<32x4xf32, #tpu.memory_space<vmem>>, %arg14: memref<1x4xf32, #tpu.memory_space<vmem>>, %arg15: memref<32x4xf32, #tpu.memory_space<vmem>>, %arg16: memref<32x256xf32, #tpu.memory_space<vmem>>) attributes {dimension_semantics = [#tpu.dimension_semantics<parallel>], iteration_bounds = array<i64: 2>, scalar_prefetch = 0 : i64, scratch_operands = 1 : i64, tpu.core_type = #tpu.core_type<tc>, window_params = [{transform_indices = @transform_0, window_bounds = array<i64: 32, 256>}, {pipeline_mode = #tpu.pipeline_mode<synchronous>, transform_indices = @transform_1, window_bounds = array<i64: 256, 256>}, {pipeline_mode = #tpu.pipeline_mode<synchronous>, transform_indices = @transform_2, window_bounds = array<i64: 32, 256>}, {pipeline_mode = #tpu.pipeline_mode<synchronous>, transform_indices = @transform_3, window_bounds = array<i64: 32, 256>}, {pipeline_mode = #tpu.pipeline_mode<synchronous>, transform_indices = @transform_4, window_bounds = array<i64: 1, 256>}, {pipeline_mode = #tpu.pipeline_mode<synchronous>, transform_indices = @transform_5, window_bounds = array<i64: 256, 8>}, {pipeline_mode = #tpu.pipeline_mode<synchronous>, transform_indices = @transform_6, window_bounds = array<i64: 8, 256>}, {pipeline_mode = #tpu.pipeline_mode<synchronous>, transform_indices = @transform_7, window_bounds = array<i64: 256, 32>}, {pipeline_mode = #tpu.pipeline_mode<synchronous>, transform_indices = @transform_8, window_bounds = array<i64: 32, 128>}, {pipeline_mode = #tpu.pipeline_mode<synchronous>, transform_indices = @transform_9, window_bounds = array<i64: 32, 128>}, {pipeline_mode = #tpu.pipeline_mode<synchronous>, transform_indices = @transform_10, window_bounds = array<i64: 1, 128>}, {pipeline_mode = #tpu.pipeline_mode<synchronous>, transform_indices = @transform_11, window_bounds = array<i64: 32, 4>}, {pipeline_mode = #tpu.pipeline_mode<synchronous>, transform_indices = @transform_12, window_bounds = array<i64: 32, 4>}, {pipeline_mode = #tpu.pipeline_mode<synchronous>, transform_indices = @transform_13, window_bounds = array<i64: 1, 4>}, {transform_indices = @transform_14, window_bounds = array<i64: 32, 4>}]} {
    %c0 = arith.constant 0 : index
    %c0_0 = arith.constant 0 : index
    %0 = vector.load %arg1[%c0, %c0_0] : memref<32x256xf32, #tpu.memory_space<vmem>>, vector<32x256xf32>
    %c0_1 = arith.constant 0 : index
    %c0_2 = arith.constant 0 : index
    %1 = vector.load %arg2[%c0_1, %c0_2] : memref<256x256xf32, #tpu.memory_space<vmem>>, vector<256x256xf32>
    %cst = arith.constant dense<0.000000e+00> : vector<32x256xf32>
    %2 = tpu.matmul %0, %1, %cst {dimension_numbers = #tpu.dot_dimension_numbers<[1], [0], [0], [1], [0, 0, 1, 1], [], []>} : vector<32x256xf32>, vector<256x256xf32>, vector<32x256xf32> -> vector<32x256xf32>
    %c0_3 = arith.constant 0 : index
    %c0_4 = arith.constant 0 : index
    %3 = vector.load %arg5[%c0_3, %c0_4] : memref<1x256xf32, #tpu.memory_space<vmem>>, vector<1x256xf32>
    %4 = vector.broadcast %3 : vector<1x256xf32> to vector<32x256xf32>
    %5 = arith.addf %2, %4 : vector<32x256xf32>
    %c0_5 = arith.constant 0 : index
    %c0_6 = arith.constant 0 : index
    %6 = vector.load %arg16[%c0_5, %c0_6] : memref<32x256xf32, #tpu.memory_space<vmem>>, vector<32x256xf32>
    tpu.vector_store %arg16[%c0_5, %c0_6], %5 {strides = array<i32>} : memref<32x256xf32, #tpu.memory_space<vmem>>, vector<32x256xf32>,
    %c0_7 = arith.constant 0 : index
    %c0_8 = arith.constant 0 : index
    %7 = vector.load %arg3[%c0_7, %c0_8] : memref<32x256xf32, #tpu.memory_space<vmem>>, vector<32x256xf32>
    %c0_9 = arith.constant 0 : index
    %c0_10 = arith.constant 0 : index
    %8 = vector.load %arg4[%c0_9, %c0_10] : memref<32x256xf32, #tpu.memory_space<vmem>>, vector<32x256xf32>
    %c0_11 = arith.constant 0 : index
    %c0_12 = arith.constant 0 : index
    %9 = vector.load %arg6[%c0_11, %c0_12] : memref<256x8xf32, #tpu.memory_space<vmem>>, vector<256x8xf32>
    %c0_13 = arith.constant 0 : index
    %c0_14 = arith.constant 0 : index
    %10 = vector.load %arg7[%c0_13, %c0_14] : memref<8x256xf32, #tpu.memory_space<vmem>>, vector<8x256xf32>
    %c0_15 = arith.constant 0 : index
    %c0_16 = arith.constant 0 : index
    %11 = vector.load %arg8[%c0_15, %c0_16] : memref<256x32xf32, #tpu.memory_space<vmem>>, vector<256x32xf32>
    %c0_17 = arith.constant 0 : index
    %c0_18 = arith.constant 0 : index
    %12 = vector.load %arg9[%c0_17, %c0_18] : memref<32x128xf32, #tpu.memory_space<vmem>>, vector<32x128xf32>
    %c0_19 = arith.constant 0 : index
    %c0_20 = arith.constant 0 : index
    %13 = vector.load %arg10[%c0_19, %c0_20] : memref<32x128xf32, #tpu.memory_space<vmem>>, vector<32x128xf32>
    %c0_21 = arith.constant 0 : index
    %c0_22 = arith.constant 0 : index
    %14 = vector.load %arg11[%c0_21, %c0_22] : memref<1x128xf32, #tpu.memory_space<vmem>>, vector<1x128xf32>
    %cst_23 = arith.constant 0.000000e+00 : f32
    %15 = vector.broadcast %cst_23 : f32 to vector<32x32xf32>
    %cst_24 = arith.constant 0.000000e+00 : f32
    %16 = vector.broadcast %cst_24 : f32 to vector<32x32xf32>
    %cst_25 = arith.constant 0.000000e+00 : f32
    %17 = vector.broadcast %cst_25 : f32 to vector<32x32xf32>
    %c0_i32 = arith.constant 0 : i32
    %c8_i32 = arith.constant 8 : i32
    %18 = arith.addi %c0_i32, %c8_i32 : i32
    %c1_i32 = arith.constant 1 : i32
    %19:3 = scf.for %arg17 = %c0_i32 to %18 step %c1_i32 iter_args(%arg18 = %15, %arg19 = %16, %arg20 = %17) -> (vector<32x32xf32>, vector<32x32xf32>, vector<32x32xf32>)  : i32 {
      %c0_36 = arith.constant 0 : index
      %c0_37 = arith.constant 0 : index
      %29 = vector.load %arg16[%c0_36, %c0_37] : memref<32x256xf32, #tpu.memory_space<vmem>>, vector<32x256xf32>
      %cst_38 = arith.constant dense<0.000000e+00> : vector<32x256xf32>
      %30 = tpu.matmul %arg18, %7, %cst_38 {dimension_numbers = #tpu.dot_dimension_numbers<[1], [0], [0], [1], [0, 0, 1, 1], [], []>} : vector<32x32xf32>, vector<32x256xf32>, vector<32x256xf32> -> vector<32x256xf32>
      %31 = arith.addf %29, %30 : vector<32x256xf32>
      %cst_39 = arith.constant dense<0.000000e+00> : vector<32x256xf32>
      %32 = tpu.matmul %arg19, %8, %cst_39 {dimension_numbers = #tpu.dot_dimension_numbers<[1], [0], [0], [1], [0, 0, 1, 1], [], []>} : vector<32x32xf32>, vector<32x256xf32>, vector<32x256xf32> -> vector<32x256xf32>
      %33 = arith.addf %31, %32 : vector<32x256xf32>
      %34 = math.tanh %33 : vector<32x256xf32>
      %cst_40 = arith.constant dense<0.000000e+00> : vector<32x8xf32>
      %35 = tpu.matmul %34, %9, %cst_40 {dimension_numbers = #tpu.dot_dimension_numbers<[1], [0], [0], [1], [0, 0, 1, 1], [], []>} : vector<32x256xf32>, vector<256x8xf32>, vector<32x8xf32> -> vector<32x8xf32>
      %cst_41 = arith.constant dense<0xFF800000> : vector<32xf32>
      %36 = vector.multi_reduction <maximumf>, %35, %cst_41 [1] : vector<32x8xf32> to vector<32xf32>
      %37 = vector.shape_cast %36 : vector<32xf32> to vector<32x1xf32>
      %38 = vector.broadcast %37 : vector<32x1xf32> to vector<32x8xf32>
      %39 = arith.subf %35, %38 : vector<32x8xf32>
      %40 = math.exp %39 : vector<32x8xf32>
      %cst_42 = arith.constant dense<0.000000e+00> : vector<32xf32>
      %41 = vector.multi_reduction <add>, %40, %cst_42 [1] : vector<32x8xf32> to vector<32xf32>
      %42 = vector.shape_cast %41 : vector<32xf32> to vector<32x1xf32>
      %43 = tpu.reciprocal %42 {approx = true} : vector<32x1xf32> -> vector<32x1xf32>
      %cst_43 = arith.constant dense<0.000000e+00> : vector<32x256xf32>
      %44 = tpu.matmul %40, %10, %cst_43 {dimension_numbers = #tpu.dot_dimension_numbers<[1], [0], [0], [1], [0, 0, 1, 1], [], []>} : vector<32x8xf32>, vector<8x256xf32>, vector<32x256xf32> -> vector<32x256xf32>
      %c0_44 = arith.constant 0 : index
      %c0_45 = arith.constant 0 : index
      %45 = vector.load %arg1[%c0_44, %c0_45] : memref<32x256xf32, #tpu.memory_space<vmem>>, vector<32x256xf32>
      %46 = arith.mulf %44, %45 : vector<32x256xf32>
      %cst_46 = arith.constant dense<0.000000e+00> : vector<32x32xf32>
      %47 = tpu.matmul %46, %11, %cst_46 {dimension_numbers = #tpu.dot_dimension_numbers<[1], [0], [0], [1], [0, 0, 1, 1], [], []>} : vector<32x256xf32>, vector<256x32xf32>, vector<32x32xf32> -> vector<32x32xf32>
      %48 = vector.broadcast %43 : vector<32x1xf32> to vector<32x32xf32>
      %49 = arith.mulf %47, %48 : vector<32x32xf32>
      %cst_47 = arith.constant dense<0.000000e+00> : vector<32x128xf32>
      %50 = tpu.matmul %49, %12, %cst_47 {dimension_numbers = #tpu.dot_dimension_numbers<[1], [0], [0], [1], [0, 0, 1, 1], [], []>} : vector<32x32xf32>, vector<32x128xf32>, vector<32x128xf32> -> vector<32x128xf32>
      %cst_48 = arith.constant dense<0.000000e+00> : vector<32x128xf32>
      %51 = tpu.matmul %arg18, %13, %cst_48 {dimension_numbers = #tpu.dot_dimension_numbers<[1], [0], [0], [1], [0, 0, 1, 1], [], []>} : vector<32x32xf32>, vector<32x128xf32>, vector<32x128xf32> -> vector<32x128xf32>
      %52 = arith.addf %50, %51 : vector<32x128xf32>
      %53 = vector.broadcast %14 : vector<1x128xf32> to vector<32x128xf32>
      %54 = arith.addf %52, %53 : vector<32x128xf32>
      %55 = vector.extract_strided_slice %54 {offsets = [0, 0], sizes = [32, 32], strides = [1, 1]} : vector<32x128xf32> to vector<32x32xf32>
      %56 = arith.negf %55 : vector<32x32xf32>
      %57 = math.exp %56 : vector<32x32xf32>
      %cst_49 = arith.constant 1.000000e+00 : f32
      %58 = vector.broadcast %cst_49 : f32 to vector<32x32xf32>
      %59 = arith.addf %58, %57 : vector<32x32xf32>
      %60 = arith.divf %58, %59 : vector<32x32xf32>
      %61 = vector.extract_strided_slice %54 {offsets = [0, 32], sizes = [32, 32], strides = [1, 1]} : vector<32x128xf32> to vector<32x32xf32>
      %62 = arith.negf %61 : vector<32x32xf32>
      %63 = math.exp %62 : vector<32x32xf32>
      %cst_50 = arith.constant 1.000000e+00 : f32
      %64 = vector.broadcast %cst_50 : f32 to vector<32x32xf32>
      %65 = arith.addf %64, %63 : vector<32x32xf32>
      %66 = arith.divf %64, %65 : vector<32x32xf32>
      %67 = vector.extract_strided_slice %54 {offsets = [0, 64], sizes = [32, 32], strides = [1, 1]} : vector<32x128xf32> to vector<32x32xf32>
      %68 = math.tanh %67 : vector<32x32xf32>
      %69 = vector.extract_strided_slice %54 {offsets = [0, 96], sizes = [32, 32], strides = [1, 1]} : vector<32x128xf32> to vector<32x32xf32>
      %70 = arith.negf %69 : vector<32x32xf32>
      %71 = math.exp %70 : vector<32x32xf32>
      %cst_51 = arith.constant 1.000000e+00 : f32
      %72 = vector.broadcast %cst_51 : f32 to vector<32x32xf32>
      %73 = arith.addf %72, %71 : vector<32x32xf32>
      %74 = arith.divf %72, %73 : vector<32x32xf32>
      %75 = arith.mulf %66, %arg19 : vector<32x32xf32>
      %76 = arith.mulf %60, %68 : vector<32x32xf32>
      %77 = arith.addf %75, %76 : vector<32x32xf32>
      %78 = math.tanh %77 : vector<32x32xf32>
      %79 = arith.mulf %74, %78 : vector<32x32xf32>
      scf.yield %79, %77, %49 : vector<32x32xf32>, vector<32x32xf32>, vector<32x32xf32>
    }
    %c0_26 = arith.constant 0 : index
    %c0_27 = arith.constant 0 : index
    %20 = vector.load %arg12[%c0_26, %c0_27] : memref<32x4xf32, #tpu.memory_space<vmem>>, vector<32x4xf32>
    %cst_28 = arith.constant dense<0.000000e+00> : vector<32x4xf32>
    %21 = tpu.matmul %19#0, %20, %cst_28 {dimension_numbers = #tpu.dot_dimension_numbers<[1], [0], [0], [1], [0, 0, 1, 1], [], []>} : vector<32x32xf32>, vector<32x4xf32>, vector<32x4xf32> -> vector<32x4xf32>
    %c0_29 = arith.constant 0 : index
    %c0_30 = arith.constant 0 : index
    %22 = vector.load %arg13[%c0_29, %c0_30] : memref<32x4xf32, #tpu.memory_space<vmem>>, vector<32x4xf32>
    %cst_31 = arith.constant dense<0.000000e+00> : vector<32x4xf32>
    %23 = tpu.matmul %19#2, %22, %cst_31 {dimension_numbers = #tpu.dot_dimension_numbers<[1], [0], [0], [1], [0, 0, 1, 1], [], []>} : vector<32x32xf32>, vector<32x4xf32>, vector<32x4xf32> -> vector<32x4xf32>
    %24 = arith.addf %21, %23 : vector<32x4xf32>
    %c0_32 = arith.constant 0 : index
    %c0_33 = arith.constant 0 : index
    %25 = vector.load %arg14[%c0_32, %c0_33] : memref<1x4xf32, #tpu.memory_space<vmem>>, vector<1x4xf32>
    %26 = vector.broadcast %25 : vector<1x4xf32> to vector<32x4xf32>
    %27 = arith.addf %24, %26 : vector<32x4xf32>
    %c0_34 = arith.constant 0 : index
    %c0_35 = arith.constant 0 : index
    %28 = vector.load %arg15[%c0_34, %c0_35] : memref<32x4xf32, #tpu.memory_space<vmem>>, vector<32x4xf32>
    tpu.vector_store %arg15[%c0_34, %c0_35], %27 {strides = array<i32>} : memref<32x4xf32, #tpu.memory_space<vmem>>, vector<32x4xf32>,
    return
  }
  func.func @transform_0(%arg0: i32) -> (i32, i32) {
    %c0_i32 = arith.constant 0 : i32
    %c0_i32_0 = arith.constant 0 : i32
    return %arg0, %c0_i32 : i32, i32
  }
  func.func @transform_1(%arg0: i32) -> (i32, i32) {
    %c0_i32 = arith.constant 0 : i32
    %c0_i32_0 = arith.constant 0 : i32
    %c0_i32_1 = arith.constant 0 : i32
    return %c0_i32, %c0_i32_0 : i32, i32
  }
  func.func @transform_2(%arg0: i32) -> (i32, i32) {
    %c0_i32 = arith.constant 0 : i32
    %c0_i32_0 = arith.constant 0 : i32
    %c0_i32_1 = arith.constant 0 : i32
    return %c0_i32, %c0_i32_0 : i32, i32
  }
  func.func @transform_3(%arg0: i32) -> (i32, i32) {
    %c0_i32 = arith.constant 0 : i32
    %c0_i32_0 = arith.constant 0 : i32
    %c0_i32_1 = arith.constant 0 : i32
    return %c0_i32, %c0_i32_0 : i32, i32
  }
  func.func @transform_4(%arg0: i32) -> (i32, i32) {
    %c0_i32 = arith.constant 0 : i32
    %c0_i32_0 = arith.constant 0 : i32
    %c0_i32_1 = arith.constant 0 : i32
    return %c0_i32, %c0_i32_0 : i32, i32
  }
  func.func @transform_5(%arg0: i32) -> (i32, i32) {
    %c0_i32 = arith.constant 0 : i32
    %c0_i32_0 = arith.constant 0 : i32
    %c0_i32_1 = arith.constant 0 : i32
    return %c0_i32, %c0_i32_0 : i32, i32
  }
  func.func @transform_6(%arg0: i32) -> (i32, i32) {
    %c0_i32 = arith.constant 0 : i32
    %c0_i32_0 = arith.constant 0 : i32
    %c0_i32_1 = arith.constant 0 : i32
    return %c0_i32, %c0_i32_0 : i32, i32
  }
  func.func @transform_7(%arg0: i32) -> (i32, i32) {
    %c0_i32 = arith.constant 0 : i32
    %c0_i32_0 = arith.constant 0 : i32
    %c0_i32_1 = arith.constant 0 : i32
    return %c0_i32, %c0_i32_0 : i32, i32
  }
  func.func @transform_8(%arg0: i32) -> (i32, i32) {
    %c0_i32 = arith.constant 0 : i32
    %c0_i32_0 = arith.constant 0 : i32
    %c0_i32_1 = arith.constant 0 : i32
    return %c0_i32, %c0_i32_0 : i32, i32
  }
  func.func @transform_9(%arg0: i32) -> (i32, i32) {
    %c0_i32 = arith.constant 0 : i32
    %c0_i32_0 = arith.constant 0 : i32
    %c0_i32_1 = arith.constant 0 : i32
    return %c0_i32, %c0_i32_0 : i32, i32
  }
  func.func @transform_10(%arg0: i32) -> (i32, i32) {
    %c0_i32 = arith.constant 0 : i32
    %c0_i32_0 = arith.constant 0 : i32
    %c0_i32_1 = arith.constant 0 : i32
    return %c0_i32, %c0_i32_0 : i32, i32
  }
  func.func @transform_11(%arg0: i32) -> (i32, i32) {
    %c0_i32 = arith.constant 0 : i32
    %c0_i32_0 = arith.constant 0 : i32
    %c0_i32_1 = arith.constant 0 : i32
    return %c0_i32, %c0_i32_0 : i32, i32
  }
  func.func @transform_12(%arg0: i32) -> (i32, i32) {
    %c0_i32 = arith.constant 0 : i32
    %c0_i32_0 = arith.constant 0 : i32
    %c0_i32_1 = arith.constant 0 : i32
    return %c0_i32, %c0_i32_0 : i32, i32
  }
  func.func @transform_13(%arg0: i32) -> (i32, i32) {
    %c0_i32 = arith.constant 0 : i32
    %c0_i32_0 = arith.constant 0 : i32
    %c0_i32_1 = arith.constant 0 : i32
    return %c0_i32, %c0_i32_0 : i32, i32
  }
  func.func @transform_14(%arg0: i32) -> (i32, i32) {
    %c0_i32 = arith.constant 0 : i32
    %c0_i32_0 = arith.constant 0 : i32
    return %arg0, %c0_i32 : i32, i32
  }
}

</mosaic_0001>

<llo_original>
// kernel: tpu_custom_call.1
$region0: #{tpu_custom_call.1}
  #allocation0 [shape = 'u32[]', space=smem, size = 0x4, offset = 0x4, fixed_abs, tag = 'smem constant byte address 0x4 - core index']
  #allocation1 [shape = 'u32[144,128]{1,0:T(1,128)}', space=vmem, size = 0x12000, scoped, tag = 'internal scratch']
  #allocation2 [shape = 'f32[32,256]{1,0:T(8,128)}', space=vmem, size = 0x8000, scoped, tag = 'scratch operand']
  %s0 = inlined_call_operand.vmem [shape: f32[64,256], index: 0, kind: input, shape index: {}]
  %s1 = inlined_call_operand.vmem [shape: f32[256,256], index: 1, kind: input, shape index: {}]
  %s2 = inlined_call_operand.hbm [shape: f32[32,256], index: 2, kind: input, shape index: {}]
  %s3 = inlined_call_operand.hbm [shape: f32[32,256], index: 3, kind: input, shape index: {}]
  %s4 = inlined_call_operand.vmem [shape: f32[1,256], index: 4, kind: input, shape index: {}]
  %s5 = inlined_call_operand.vmem [shape: f32[256,8], index: 5, kind: input, shape index: {}]
  %s6 = inlined_call_operand.hbm [shape: f32[8,256], index: 6, kind: input, shape index: {}]
  %s7 = inlined_call_operand.vmem [shape: f32[256,32], index: 7, kind: input, shape index: {}]
  %s8 = inlined_call_operand.vmem [shape: f32[32,128], index: 8, kind: input, shape index: {}]
  %s9 = inlined_call_operand.hbm [shape: f32[32,128], index: 9, kind: input, shape index: {}]
  %s10 = inlined_call_operand.vmem [shape: f32[1,128], index: 10, kind: input, shape index: {}]
  %s11 = inlined_call_operand.vmem [shape: f32[32,4], index: 11, kind: input, shape index: {}]
  %s12 = inlined_call_operand.vmem [shape: f32[32,4], index: 12, kind: input, shape index: {}]
  %s13 = inlined_call_operand.vmem [shape: f32[1,4], index: 13, kind: input, shape index: {}]
  %s14 = inlined_call_operand.vmem [shape: f32[64,4], index: 14, kind: output, shape index: {}]
  %s15 = sld [smem:[#allocation0]]
  $region112: #{tpu_custom_call.1} parent=0
    _
  %s17 = ssub.s32 1, %s15
  %s18 = scalar_select 0, %s17, %s15
  $region1: #{tpu_custom_call.1} parent=0
    #allocation3 [shape = 'u8[32768]{0}', space=vmem, size = 0x8000, scoped, tag = 'input window, operand 2, single buffered']
    #allocation4 [shape = 's32[2]{0}', space=sflag, size = 0x8, scoped, tag = 'scoped memory for tpu_custom_call.1']
    #allocation5 [shape = 'u8[32768]{0}', space=vmem, size = 0x8000, scoped, tag = 'input window, operand 3, single buffered']
    #allocation6 [shape = 's32[1]{0}', space=sflag, size = 0x4, scoped, tag = 'scoped memory for tpu_custom_call.1']
    #allocation7 [shape = 'u8[8192]{0}', space=vmem, size = 0x2000, scoped, tag = 'input window, operand 6, single buffered']
    #allocation8 [shape = 'u8[16384]{0}', space=vmem, size = 0x4000, scoped, tag = 'input window, operand 9, single buffered']
    #allocation9 [shape = 's32[1]{0}', space=sflag, size = 0x4, scoped, tag = 'scoped memory for tpu_custom_call.1']
    %19 = vsyncpa [#allocation4], 0
    %20 = vsyncpa [#allocation6], 0
    %21 = vsyncpa [#allocation9], 0
    loop: start=0, step=1, limit=4
    $region2: #{tpu_custom_call.1} parent=1 // loop_pre_header
      _
    $region3: #{tpu_custom_call.1} parent=1 // loop_header
      %s23 = sphi 0, %s27
      %p24 = scmp.ge.s32.totalorder %s23, 4
      %s33 = sphi 0, %s35
      %s36 = sphi 0, %s33
      %s37 = sphi 0, %s36
      %s53 = sphi 0, %s37
      %s57 = sphi 0, %s57
      %s59 = sphi 0, %s57
      %s60 = sphi 0, %s59
      %s74 = sphi 0, %s60
      %s78 = sphi 0, %s78
      %s80 = sphi 0, %s78
      %s81 = sphi 0, %s80
      %s95 = sphi 0, %s81
      %s99 = sphi 0, %s99
      %s101 = sphi 0, %s99
      %s102 = sphi 0, %s101
      %s116 = sphi 0, %s102
      %s120 = sphi 0, %s120
      %s122 = sphi 0, %s120
      %s123 = sphi 0, %s122
      %s137 = sphi 0, %s123
      %s141 = sphi 0, %s141
      %s143 = sphi 0, %s141
      %s144 = sphi 0, %s143
      %s158 = sphi 0, %s144
      %s162 = sphi 0, %s162
      %s164 = sphi 0, %s162
      %s165 = sphi 0, %s164
      %s179 = sphi 0, %s165
      %s183 = sphi 0, %s183
      %s185 = sphi 0, %s183
      %s186 = sphi 0, %s185
      %s200 = sphi 0, %s186
      %s204 = sphi 0, %s204
      %s206 = sphi 0, %s204
      %s207 = sphi 0, %s206
      %s221 = sphi 0, %s207
      %s225 = sphi 0, %s225
      %s227 = sphi 0, %s225
      %s228 = sphi 0, %s227
      %s242 = sphi 0, %s228
      %s246 = sphi 0, %s246
      %s248 = sphi 0, %s246
      %s249 = sphi 0, %s248
      %s263 = sphi 0, %s249
      %s267 = sphi 0, %s267
      %s269 = sphi 0, %s267
      %s270 = sphi 0, %s269
      %s284 = sphi 0, %s270
      %s288 = sphi 0, %s288
      %s290 = sphi 0, %s288
      %s291 = sphi 0, %s290
      %s305 = sphi 0, %s291
      %s309 = sphi 0, %s309
      %s311 = sphi 0, %s309
      %s312 = sphi 0, %s311
      %s326 = sphi 0, %s312
      %s332 = sphi 0, %s334
      %s335 = sphi 0, %s332
      %s336 = sphi 0, %s335
      %s352 = sphi 0, %s336
    $region4: #{tpu_custom_call.1} parent=1 // loop_header_branch
      %26 = sbr.rel (%p24) target = $region8
    $region5: #{tpu_custom_call.1} parent=1 // loop_body
      %s28 = ssub.s32 %s23, 1
      %s29 = ssub.s32 %s23, 2
      %s30 = sadd.s32 %s23, 1
      %s31 = ssub.s32 %s23, %s30
      %p32 = scmp.eq.s32.totalorder %s31, 0
      %s34 = sadd.s32 %s33, 1
      %s35 = scalar_select %p32, %s33, %s34
      %p38 = pneg %p32
      %p39 = scmp.eq.s32.totalorder %s23, 1
      %p40 = por %p38, %p39
      %p41 = scmp.ne.s32.totalorder %s33, %s36
      %p42 = scmp.eq.s32.totalorder %s23, 0
      %p43 = por %p41, %p42
      %p44 = scmp.ne.s32.totalorder %s33, %s36
      %p45 = scmp.eq.s32.totalorder %s28, 1
      %p46 = por %p44, %p45
      %p47 = scmp.ne.s32.totalorder %s36, %s37
      %p48 = scmp.eq.s32.totalorder %s28, 0
      %p49 = por %p47, %p48
      %p50 = scmp.ne.s32.totalorder %s36, %s37
      %p51 = scmp.eq.s32.totalorder %s29, 1
      %p52 = por %p50, %p51
      %p54 = scmp.ne.s32.totalorder %s37, %s53
      %p55 = scmp.eq.s32.totalorder %s29, 0
      %p56 = por %p54, %p55
      %s58 = sadd.s32 %s57, 1
      %p61 = scmp.eq.s32.totalorder %s23, 1
      %p62 = scmp.ne.s32.totalorder %s57, %s59
      %p63 = scmp.eq.s32.totalorder %s23, 0
      %p64 = por %p62, %p63
      %p65 = scmp.ne.s32.totalorder %s57, %s59
      %p66 = scmp.eq.s32.totalorder %s28, 1
      %p67 = por %p65, %p66
      %p68 = scmp.ne.s32.totalorder %s59, %s60
      %p69 = scmp.eq.s32.totalorder %s28, 0
      %p70 = por %p68, %p69
      %p71 = scmp.ne.s32.totalorder %s59, %s60
      %p72 = scmp.eq.s32.totalorder %s29, 1
      %p73 = por %p71, %p72
      %p75 = scmp.ne.s32.totalorder %s60, %s74
      %p76 = scmp.eq.s32.totalorder %s29, 0
      %p77 = por %p75, %p76
      %s79 = sadd.s32 %s78, 1
      %p82 = scmp.eq.s32.totalorder %s23, 1
      %p83 = scmp.ne.s32.totalorder %s78, %s80
      %p84 = scmp.eq.s32.totalorder %s23, 0
      %p85 = por %p83, %p84
      %p86 = scmp.ne.s32.totalorder %s78, %s80
      %p87 = scmp.eq.s32.totalorder %s28, 1
      %p88 = por %p86, %p87
      %p89 = scmp.ne.s32.totalorder %s80, %s81
      %p90 = scmp.eq.s32.totalorder %s28, 0
      %p91 = por %p89, %p90
      %p92 = scmp.ne.s32.totalorder %s80, %s81
      %p93 = scmp.eq.s32.totalorder %s29, 1
      %p94 = por %p92, %p93
      %p96 = scmp.ne.s32.totalorder %s81, %s95
      %p97 = scmp.eq.s32.totalorder %s29, 0
      %p98 = por %p96, %p97
      %s100 = sadd.s32 %s99, 1
      %p103 = scmp.eq.s32.totalorder %s23, 1
      %p104 = scmp.ne.s32.totalorder %s99, %s101
      %p105 = scmp.eq.s32.totalorder %s23, 0
      %p106 = por %p104, %p105
      %p107 = scmp.ne.s32.totalorder %s99, %s101
      %p108 = scmp.eq.s32.totalorder %s28, 1
      %p109 = por %p107, %p108
      %p110 = scmp.ne.s32.totalorder %s101, %s102
      %p111 = scmp.eq.s32.totalorder %s28, 0
      %p112 = por %p110, %p111
      %p113 = scmp.ne.s32.totalorder %s101, %s102
      %p114 = scmp.eq.s32.totalorder %s29, 1
      %p115 = por %p113, %p114
      %p117 = scmp.ne.s32.totalorder %s102, %s116
      %p118 = scmp.eq.s32.totalorder %s29, 0
      %p119 = por %p117, %p118
      %s121 = sadd.s32 %s120, 1
      %p124 = scmp.eq.s32.totalorder %s23, 1
      %p125 = scmp.ne.s32.totalorder %s120, %s122
      %p126 = scmp.eq.s32.totalorder %s23, 0
      %p127 = por %p125, %p126
      %p128 = scmp.ne.s32.totalorder %s120, %s122
      %p129 = scmp.eq.s32.totalorder %s28, 1
      %p130 = por %p128, %p129
      %p131 = scmp.ne.s32.totalorder %s122, %s123
      %p132 = scmp.eq.s32.totalorder %s28, 0
      %p133 = por %p131, %p132
      %p134 = scmp.ne.s32.totalorder %s122, %s123
      %p135 = scmp.eq.s32.totalorder %s29, 1
      %p136 = por %p134, %p135
      %p138 = scmp.ne.s32.totalorder %s123, %s137
      %p139 = scmp.eq.s32.totalorder %s29, 0
      %p140 = por %p138, %p139
      %s142 = sadd.s32 %s141, 1
      %p145 = scmp.eq.s32.totalorder %s23, 1
      %p146 = scmp.ne.s32.totalorder %s141, %s143
      %p147 = scmp.eq.s32.totalorder %s23, 0
      %p148 = por %p146, %p147
      %p149 = scmp.ne.s32.totalorder %s141, %s143
      %p150 = scmp.eq.s32.totalorder %s28, 1
      %p151 = por %p149, %p150
      %p152 = scmp.ne.s32.totalorder %s143, %s144
      %p153 = scmp.eq.s32.totalorder %s28, 0
      %p154 = por %p152, %p153
      %p155 = scmp.ne.s32.totalorder %s143, %s144
      %p156 = scmp.eq.s32.totalorder %s29, 1
      %p157 = por %p155, %p156
      %p159 = scmp.ne.s32.totalorder %s144, %s158
      %p160 = scmp.eq.s32.totalorder %s29, 0
      %p161 = por %p159, %p160
      %s163 = sadd.s32 %s162, 1
      %p166 = scmp.eq.s32.totalorder %s23, 1
      %p167 = scmp.ne.s32.totalorder %s162, %s164
      %p168 = scmp.eq.s32.totalorder %s23, 0
      %p169 = por %p167, %p168
      %p170 = scmp.ne.s32.totalorder %s162, %s164
      %p171 = scmp.eq.s32.totalorder %s28, 1
      %p172 = por %p170, %p171
      %p173 = scmp.ne.s32.totalorder %s164, %s165
      %p174 = scmp.eq.s32.totalorder %s28, 0
      %p175 = por %p173, %p174
      %p176 = scmp.ne.s32.totalorder %s164, %s165
      %p177 = scmp.eq.s32.totalorder %s29, 1
      %p178 = por %p176, %p177
      %p180 = scmp.ne.s32.totalorder %s165, %s179
      %p181 = scmp.eq.s32.totalorder %s29, 0
      %p182 = por %p180, %p181
      %s184 = sadd.s32 %s183, 1
      %p187 = scmp.eq.s32.totalorder %s23, 1
      %p188 = scmp.ne.s32.totalorder %s183, %s185
      %p189 = scmp.eq.s32.totalorder %s23, 0
      %p190 = por %p188, %p189
      %p191 = scmp.ne.s32.totalorder %s183, %s185
      %p192 = scmp.eq.s32.totalorder %s28, 1
      %p193 = por %p191, %p192
      %p194 = scmp.ne.s32.totalorder %s185, %s186
      %p195 = scmp.eq.s32.totalorder %s28, 0
      %p196 = por %p194, %p195
      %p197 = scmp.ne.s32.totalorder %s185, %s186
      %p198 = scmp.eq.s32.totalorder %s29, 1
      %p199 = por %p197, %p198
      %p201 = scmp.ne.s32.totalorder %s186, %s200
      %p202 = scmp.eq.s32.totalorder %s29, 0
      %p203 = por %p201, %p202
      %s205 = sadd.s32 %s204, 1
      %p208 = scmp.eq.s32.totalorder %s23, 1
      %p209 = scmp.ne.s32.totalorder %s204, %s206
      %p210 = scmp.eq.s32.totalorder %s23, 0
      %p211 = por %p209, %p210
      %p212 = scmp.ne.s32.totalorder %s204, %s206
      %p213 = scmp.eq.s32.totalorder %s28, 1
      %p214 = por %p212, %p213
      %p215 = scmp.ne.s32.totalorder %s206, %s207
      %p216 = scmp.eq.s32.totalorder %s28, 0
      %p217 = por %p215, %p216
      %p218 = scmp.ne.s32.totalorder %s206, %s207
      %p219 = scmp.eq.s32.totalorder %s29, 1
      %p220 = por %p218, %p219
      %p222 = scmp.ne.s32.totalorder %s207, %s221
      %p223 = scmp.eq.s32.totalorder %s29, 0
      %p224 = por %p222, %p223
      %s226 = sadd.s32 %s225, 1
      %p229 = scmp.eq.s32.totalorder %s23, 1
      %p230 = scmp.ne.s32.totalorder %s225, %s227
      %p231 = scmp.eq.s32.totalorder %s23, 0
      %p232 = por %p230, %p231
      %p233 = scmp.ne.s32.totalorder %s225, %s227
      %p234 = scmp.eq.s32.totalorder %s28, 1
      %p235 = por %p233, %p234
      %p236 = scmp.ne.s32.totalorder %s227, %s228
      %p237 = scmp.eq.s32.totalorder %s28, 0
      %p238 = por %p236, %p237
      %p239 = scmp.ne.s32.totalorder %s227, %s228
      %p240 = scmp.eq.s32.totalorder %s29, 1
      %p241 = por %p239, %p240
      %p243 = scmp.ne.s32.totalorder %s228, %s242
      %p244 = scmp.eq.s32.totalorder %s29, 0
      %p245 = por %p243, %p244
      %s247 = sadd.s32 %s246, 1
      %p250 = scmp.eq.s32.totalorder %s23, 1
      %p251 = scmp.ne.s32.totalorder %s246, %s248
      %p252 = scmp.eq.s32.totalorder %s23, 0
      %p253 = por %p251, %p252
      %p254 = scmp.ne.s32.totalorder %s246, %s248
      %p255 = scmp.eq.s32.totalorder %s28, 1
      %p256 = por %p254, %p255
      %p257 = scmp.ne.s32.totalorder %s248, %s249
      %p258 = scmp.eq.s32.totalorder %s28, 0
      %p259 = por %p257, %p258
      %p260 = scmp.ne.s32.totalorder %s248, %s249
      %p261 = scmp.eq.s32.totalorder %s29, 1
      %p262 = por %p260, %p261
      %p264 = scmp.ne.s32.totalorder %s249, %s263
      %p265 = scmp.eq.s32.totalorder %s29, 0
      %p266 = por %p264, %p265
      %s268 = sadd.s32 %s267, 1
      %p271 = scmp.eq.s32.totalorder %s23, 1
      %p272 = scmp.ne.s32.totalorder %s267, %s269
      %p273 = scmp.eq.s32.totalorder %s23, 0
      %p274 = por %p272, %p273
      %p275 = scmp.ne.s32.totalorder %s267, %s269
      %p276 = scmp.eq.s32.totalorder %s28, 1
      %p277 = por %p275, %p276
      %p278 = scmp.ne.s32.totalorder %s269, %s270
      %p279 = scmp.eq.s32.totalorder %s28, 0
      %p280 = por %p278, %p279
      %p281 = scmp.ne.s32.totalorder %s269, %s270
      %p282 = scmp.eq.s32.totalorder %s29, 1
      %p283 = por %p281, %p282
      %p285 = scmp.ne.s32.totalorder %s270, %s284
      %p286 = scmp.eq.s32.totalorder %s29, 0
      %p287 = por %p285, %p286
      %s289 = sadd.s32 %s288, 1
      %p292 = scmp.eq.s32.totalorder %s23, 1
      %p293 = scmp.ne.s32.totalorder %s288, %s290
      %p294 = scmp.eq.s32.totalorder %s23, 0
      %p295 = por %p293, %p294
      %p296 = scmp.ne.s32.totalorder %s288, %s290
      %p297 = scmp.eq.s32.totalorder %s28, 1
      %p298 = por %p296, %p297
      %p299 = scmp.ne.s32.totalorder %s290, %s291
      %p300 = scmp.eq.s32.totalorder %s28, 0
      %p301 = por %p299, %p300
      %p302 = scmp.ne.s32.totalorder %s290, %s291
      %p303 = scmp.eq.s32.totalorder %s29, 1
      %p304 = por %p302, %p303
      %p306 = scmp.ne.s32.totalorder %s291, %s305
      %p307 = scmp.eq.s32.totalorder %s29, 0
      %p308 = por %p306, %p307
      %s310 = sadd.s32 %s309, 1
      %p313 = scmp.eq.s32.totalorder %s23, 1
      %p314 = scmp.ne.s32.totalorder %s309, %s311
      %p315 = scmp.eq.s32.totalorder %s23, 0
      %p316 = por %p314, %p315
      %p317 = scmp.ne.s32.totalorder %s309, %s311
      %p318 = scmp.eq.s32.totalorder %s28, 1
      %p319 = por %p317, %p318
      %p320 = scmp.ne.s32.totalorder %s311, %s312
      %p321 = scmp.eq.s32.totalorder %s28, 0
      %p322 = por %p320, %p321
      %p323 = scmp.ne.s32.totalorder %s311, %s312
      %p324 = scmp.eq.s32.totalorder %s29, 1
      %p325 = por %p323, %p324
      %p327 = scmp.ne.s32.totalorder %s312, %s326
      %p328 = scmp.eq.s32.totalorder %s29, 0
      %p329 = por %p327, %p328
      %s330 = ssub.s32 %s23, %s30
      %p331 = scmp.eq.s32.totalorder %s330, 0
      %s333 = sadd.s32 %s332, 1
      %s334 = scalar_select %p331, %s332, %s333
      %p337 = pneg %p331
      %p338 = scmp.eq.s32.totalorder %s23, 1
      %p339 = por %p337, %p338
      %p340 = scmp.ne.s32.totalorder %s332, %s335
      %p341 = scmp.eq.s32.totalorder %s23, 0
      %p342 = por %p340, %p341
      %p343 = scmp.ne.s32.totalorder %s332, %s335
      %p344 = scmp.eq.s32.totalorder %s28, 1
      %p345 = por %p343, %p344
      %p346 = scmp.ne.s32.totalorder %s335, %s336
      %p347 = scmp.eq.s32.totalorder %s28, 0
      %p348 = por %p346, %p347
      %p349 = scmp.ne.s32.totalorder %s335, %s336
      %p350 = scmp.eq.s32.totalorder %s29, 1
      %p351 = por %p349, %p350
      %p353 = scmp.ne.s32.totalorder %s336, %s352
      %p354 = scmp.eq.s32.totalorder %s29, 0
      %p355 = por %p353, %p354
      %p356 = scmp.le.s32.totalorder 1, %s23
      %p357 = scmp.lt.s32.totalorder %s23, 3
      %p358 = pnand %p356, %p357
      %p359 = pneg %p358
      // Predicated region
      $region9: #{tpu_custom_call.1} parent=5 // pred_check
        _
      $region10: #{tpu_custom_call.1} parent=5 // pred_check_branch
        %361 = sbr.rel (%p358) target = $region12
      $region11: #{tpu_custom_call.1} parent=5 // pred_region
        %s362 = ssub.s32 %s23, 1
        // Predicated region
        $region13: #{tpu_custom_call.1} parent=11 // pred_check
          %p363 = pneg %p70
        $region14: #{tpu_custom_call.1} parent=11 // pred_check_branch
          %365 = sbr.rel (%p363) target = $region16
        $region15: #{tpu_custom_call.1} parent=11 // pred_region
          _
        $region16: #{tpu_custom_call.1} parent=11 // pred_fallthru
          _
        // Predicated region
        $region17: #{tpu_custom_call.1} parent=11 // pred_check
          %p366 = pneg %p91
        $region18: #{tpu_custom_call.1} parent=11 // pred_check_branch
          %368 = sbr.rel (%p366) target = $region20
        $region19: #{tpu_custom_call.1} parent=11 // pred_region
          %s370 = ssub.s32 1024, 1024
          %371 = vsyncadd [#allocation4], %s370
          %s372 = sshll.u32 [#allocation3], 4
          %s373 = int_to_ptr.vmem [resolvable:$true] %s372
          %378 = dma.hbm_to_vmem [thread:$0]  %s2, 1024, %s373, [#allocation4], 256, 256, 16
        $region20: #{tpu_custom_call.1} parent=11 // pred_fallthru
          _
        // Predicated region
        $region21: #{tpu_custom_call.1} parent=11 // pred_check
          %p379 = pneg %p112
        $region22: #{tpu_custom_call.1} parent=11 // pred_check_branch
          %381 = sbr.rel (%p379) target = $region24
        $region23: #{tpu_custom_call.1} parent=11 // pred_region
          %s383 = ssub.s32 1024, 1024
          %384 = vsyncadd [#allocation6], %s383
          %s385 = sshll.u32 [#allocation5], 4
          %s386 = int_to_ptr.vmem [resolvable:$true] %s385
          %391 = dma.hbm_to_vmem [thread:$0]  %s3, 1024, %s386, [#allocation6], 256, 256, 16
        $region24: #{tpu_custom_call.1} parent=11 // pred_fallthru
          _
        // Predicated region
        $region25: #{tpu_custom_call.1} parent=11 // pred_check
          %p392 = pneg %p133
        $region26: #{tpu_custom_call.1} parent=11 // pred_check_branch
          %394 = sbr.rel (%p392) target = $region28
        $region27: #{tpu_custom_call.1} parent=11 // pred_region
          _
        $region28: #{tpu_custom_call.1} parent=11 // pred_fallthru
          _
        // Predicated region
        $region29: #{tpu_custom_call.1} parent=11 // pred_check
          %p395 = pneg %p154
        $region30: #{tpu_custom_call.1} parent=11 // pred_check_branch
          %397 = sbr.rel (%p395) target = $region32
        $region31: #{tpu_custom_call.1} parent=11 // pred_region
          _
        $region32: #{tpu_custom_call.1} parent=11 // pred_fallthru
          _
        // Predicated region
        $region33: #{tpu_custom_call.1} parent=11 // pred_check
          %p398 = pneg %p175
        $region34: #{tpu_custom_call.1} parent=11 // pred_check_branch
          %400 = sbr.rel (%p398) target = $region36
        $region35: #{tpu_custom_call.1} parent=11 // pred_region
          %s402 = ssub.s32 256, 256
          %403 = vsyncadd [#allocation6], %s402
          %s405 = sshll.u32 [#allocation7], 4
          %s406 = int_to_ptr.vmem [resolvable:$true] %s405
          %408 = dma.hbm_to_vmem [thread:$0]  %s6, 256, %s406, [#allocation6]
        $region36: #{tpu_custom_call.1} parent=11 // pred_fallthru
          _
        // Predicated region
        $region37: #{tpu_custom_call.1} parent=11 // pred_check
          %p409 = pneg %p196
        $region38: #{tpu_custom_call.1} parent=11 // pred_check_branch
          %411 = sbr.rel (%p409) target = $region40
        $region39: #{tpu_custom_call.1} parent=11 // pred_region
          _
        $region40: #{tpu_custom_call.1} parent=11 // pred_fallthru
          _
        // Predicated region
        $region41: #{tpu_custom_call.1} parent=11 // pred_check
          %p412 = pneg %p217
        $region42: #{tpu_custom_call.1} parent=11 // pred_check_branch
          %414 = sbr.rel (%p412) target = $region44
        $region43: #{tpu_custom_call.1} parent=11 // pred_region
          _
        $region44: #{tpu_custom_call.1} parent=11 // pred_fallthru
          _
        // Predicated region
        $region45: #{tpu_custom_call.1} parent=11 // pred_check
          %p415 = pneg %p238
        $region46: #{tpu_custom_call.1} parent=11 // pred_check_branch
          %417 = sbr.rel (%p415) target = $region48
        $region47: #{tpu_custom_call.1} parent=11 // pred_region
          %s419 = ssub.s32 512, 512
          %420 = vsyncadd [#allocation9], %s419
          %s421 = sshll.u32 [#allocation8], 4
          %s422 = int_to_ptr.vmem [resolvable:$true] %s421
          %427 = dma.hbm_to_vmem [thread:$0]  %s9, 512, %s422, [#allocation9], 128, 128, 8
        $region48: #{tpu_custom_call.1} parent=11 // pred_fallthru
          _
        // Predicated region
        $region49: #{tpu_custom_call.1} parent=11 // pred_check
          %p428 = pneg %p259
        $region50: #{tpu_custom_call.1} parent=11 // pred_check_branch
          %430 = sbr.rel (%p428) target = $region52
        $region51: #{tpu_custom_call.1} parent=11 // pred_region
          _
        $region52: #{tpu_custom_call.1} parent=11 // pred_fallthru
          _
        // Predicated region
        $region53: #{tpu_custom_call.1} parent=11 // pred_check
          %p431 = pneg %p280
        $region54: #{tpu_custom_call.1} parent=11 // pred_check_branch
          %433 = sbr.rel (%p431) target = $region56
        $region55: #{tpu_custom_call.1} parent=11 // pred_region
          _
        $region56: #{tpu_custom_call.1} parent=11 // pred_fallthru
          _
        // Predicated region
        $region57: #{tpu_custom_call.1} parent=11 // pred_check
          %p434 = pneg %p301
        $region58: #{tpu_custom_call.1} parent=11 // pred_check_branch
          %436 = sbr.rel (%p434) target = $region60
        $region59: #{tpu_custom_call.1} parent=11 // pred_region
          _
        $region60: #{tpu_custom_call.1} parent=11 // pred_fallthru
          _
        // Predicated region
        $region61: #{tpu_custom_call.1} parent=11 // pred_check
          %p437 = pneg %p322
        $region62: #{tpu_custom_call.1} parent=11 // pred_check_branch
          %439 = sbr.rel (%p437) target = $region64
        $region63: #{tpu_custom_call.1} parent=11 // pred_region
          _
        $region64: #{tpu_custom_call.1} parent=11 // pred_fallthru
          _
      $region12: #{tpu_custom_call.1} parent=5 // pred_fallthru
        _
      %p440 = scmp.lt.s32.totalorder %s23, 2
      // Predicated region
      $region65: #{tpu_custom_call.1} parent=5 // pred_check
        %p441 = pneg %p440
      $region66: #{tpu_custom_call.1} parent=5 // pred_check_branch
        %443 = sbr.rel (%p441) target = $region68
      $region67: #{tpu_custom_call.1} parent=5 // pred_region
        // Predicated region
        $region69: #{tpu_custom_call.1} parent=67 // pred_check
          %p444 = pneg %p43
        $region70: #{tpu_custom_call.1} parent=67 // pred_check_branch
          %446 = sbr.rel (%p444) target = $region72
        $region71: #{tpu_custom_call.1} parent=67 // pred_region
          %s447 = smul.u32 4, %s23
          %p448 = scmp.lt.s32.totalorder %s447, 7
          %s449 = scalar_select %p448, %s447, 7
          %s450 = smul.addr %s449, 2
          %s451 = smul.addr %s450, 8
          %s452 = scalar_lea.vmem %s0, %s451
          %s453 = smul.u32 4, %s23
        $region72: #{tpu_custom_call.1} parent=67 // pred_fallthru
          _
      $region68: #{tpu_custom_call.1} parent=5 // pred_fallthru
        _
      %p454 = scmp.le.s32.totalorder 1, %s23
      %p455 = scmp.lt.s32.totalorder %s23, 3
      %p456 = pnand %p454, %p455
      %p457 = pneg %p456
      // Predicated region
      $region73: #{tpu_custom_call.1} parent=5 // pred_check
        _
      $region74: #{tpu_custom_call.1} parent=5 // pred_check_branch
        %459 = sbr.rel (%p456) target = $region76
      $region75: #{tpu_custom_call.1} parent=5 // pred_region
        %s460 = ssub.s32 %s23, 1
        // Predicated region
        $region77: #{tpu_custom_call.1} parent=75 // pred_check
          %p461 = pneg %p91
        $region78: #{tpu_custom_call.1} parent=75 // pred_check_branch
          %463 = sbr.rel (%p461) target = $region80
        $region79: #{tpu_custom_call.1} parent=75 // pred_region
          %464 = dma.done [#allocation4], 1024
        $region80: #{tpu_custom_call.1} parent=75 // pred_fallthru
          _
        // Predicated region
        $region81: #{tpu_custom_call.1} parent=75 // pred_check
          %p465 = pneg %p112
        $region82: #{tpu_custom_call.1} parent=75 // pred_check_branch
          %467 = sbr.rel (%p465) target = $region84
        $region83: #{tpu_custom_call.1} parent=75 // pred_region
          %468 = dma.done [#allocation6], 1024
        $region84: #{tpu_custom_call.1} parent=75 // pred_fallthru
          _
        // Predicated region
        $region85: #{tpu_custom_call.1} parent=75 // pred_check
          %p469 = pneg %p175
        $region86: #{tpu_custom_call.1} parent=75 // pred_check_branch
          %471 = sbr.rel (%p469) target = $region88
        $region87: #{tpu_custom_call.1} parent=75 // pred_region
          %472 = dma.done [#allocation6], 256
        $region88: #{tpu_custom_call.1} parent=75 // pred_fallthru
          _
        // Predicated region
        $region89: #{tpu_custom_call.1} parent=75 // pred_check
          %p473 = pneg %p238
        $region90: #{tpu_custom_call.1} parent=75 // pred_check_branch
          %475 = sbr.rel (%p473) target = $region92
        $region91: #{tpu_custom_call.1} parent=75 // pred_region
          %476 = dma.done [#allocation9], 512
        $region92: #{tpu_custom_call.1} parent=75 // pred_fallthru
          _
        %s477 = smul.u32 4, %s28
        %p478 = scmp.lt.s32.totalorder %s477, 7
        %s479 = scalar_select %p478, %s477, 7
        %s480 = smul.addr %s479, 2
        %s481 = smul.addr %s480, 8
        %s482 = scalar_lea.vmem %s0, %s481
        %p483 = pneg %p49
        %p484 = pneg %p46
        %p485 = pneg %p70
        %p486 = pneg %p67
        %p487 = pneg %p91
        %p488 = pneg %p88
        %p489 = pneg %p112
        %p490 = pneg %p109
        %p491 = pneg %p133
        %p492 = pneg %p130
        %p493 = pneg %p154
        %p494 = pneg %p151
        %p495 = pneg %p175
        %p496 = pneg %p172
        %p497 = pneg %p196
        %p498 = pneg %p193
        %p499 = pneg %p217
        %p500 = pneg %p214
        %p501 = pneg %p238
        %p502 = pneg %p235
        %p503 = pneg %p259
        %p504 = pneg %p256
        %p505 = pneg %p280
        %p506 = pneg %p277
        %p507 = pneg %p301
        %p508 = pneg %p298
        %p509 = pneg %p322
        %p510 = pneg %p319
        %p511 = pneg %p348
        %p512 = pneg %p345
        %s513 = smul.u32 4, %s28
        %p514 = scmp.lt.s32.totalorder %s513, 7
        %s515 = scalar_select %p514, %s513, 7
        %s516 = smul.addr %s515, 8
        %s517 = scalar_lea.vmem %s14, %s516
        %s518 = smul.u32 4, %s28
        %p519 = scmp.lt.s32.totalorder %s518, 7
        %s520 = scalar_select %p519, %s518, 7
        %s521 = smul.addr %s520, 2
        %s522 = smul.addr %s521, 8
        %s523 = scalar_lea.vmem %s0, %s522
        %s524 = smul.u32 4, %s28
        %s525 = smul.u32 4, %s28
        %p526 = scmp.lt.s32.totalorder %s525, 7
        %s527 = scalar_select %p526, %s525, 7
        %s528 = smul.addr %s527, 8
        %s529 = scalar_lea.vmem %s14, %s528
        %s530 = smul.u32 4, %s28
        %v531 = vld [vmem:[%s523] sm:$0xff]
        %v532 = vld [vmem:[%s523 + $0x8] sm:$0xff]
        %v533 = vld [vmem:[%s523 + $0x10] sm:$0xff]
        %v534 = vld [vmem:[%s523 + $0x18] sm:$0xff]
        %v535 = vld [vmem:[%s523 + $0x20] sm:$0xff]
        %v536 = vld [vmem:[%s523 + $0x28] sm:$0xff]
        %v537 = vld [vmem:[%s523 + $0x30] sm:$0xff]
        %v538 = vld [vmem:[%s523 + $0x38] sm:$0xff]
        %v539 = vld [vmem:[%s1] sm:$0xff]
        %v540 = vld [vmem:[%s1 + $0x8] sm:$0xff]
        %v541 = vld [vmem:[%s1 + $0x10] sm:$0xff]
        %v542 = vld [vmem:[%s1 + $0x18] sm:$0xff]
        %v543 = vld [vmem:[%s1 + $0x20] sm:$0xff]
        %v544 = vld [vmem:[%s1 + $0x28] sm:$0xff]
        %v545 = vld [vmem:[%s1 + $0x30] sm:$0xff]
        %v546 = vld [vmem:[%s1 + $0x38] sm:$0xff]
        %v547 = vld [vmem:[%s1 + $0x40] sm:$0xff]
        %v548 = vld [vmem:[%s1 + $0x48] sm:$0xff]
        %v549 = vld [vmem:[%s1 + $0x50] sm:$0xff]
        %v550 = vld [vmem:[%s1 + $0x58] sm:$0xff]
        %v551 = vld [vmem:[%s1 + $0x60] sm:$0xff]
        %v552 = vld [vmem:[%s1 + $0x68] sm:$0xff]
        %v553 = vld [vmem:[%s1 + $0x70] sm:$0xff]
        %v554 = vld [vmem:[%s1 + $0x78] sm:$0xff]
        %v555 = vld [vmem:[%s1 + $0x80] sm:$0xff]
        %v556 = vld [vmem:[%s1 + $0x88] sm:$0xff]
        %v557 = vld [vmem:[%s1 + $0x90] sm:$0xff]
        %v558 = vld [vmem:[%s1 + $0x98] sm:$0xff]
        %v559 = vld [vmem:[%s1 + $0xa0] sm:$0xff]
        %v560 = vld [vmem:[%s1 + $0xa8] sm:$0xff]
        %v561 = vld [vmem:[%s1 + $0xb0] sm:$0xff]
        %v562 = vld [vmem:[%s1 + $0xb8] sm:$0xff]
        %v563 = vld [vmem:[%s1 + $0xc0] sm:$0xff]
        %v564 = vld [vmem:[%s1 + $0xc8] sm:$0xff]
        %v565 = vld [vmem:[%s1 + $0xd0] sm:$0xff]
        %v566 = vld [vmem:[%s1 + $0xd8] sm:$0xff]
        %v567 = vld [vmem:[%s1 + $0xe0] sm:$0xff]
        %v568 = vld [vmem:[%s1 + $0xe8] sm:$0xff]
        %v569 = vld [vmem:[%s1 + $0xf0] sm:$0xff]
        %v570 = vld [vmem:[%s1 + $0xf8] sm:$0xff]
        %v571 = vld [vmem:[%s1 + $0x100] sm:$0xff]
        %v572 = vld [vmem:[%s1 + $0x108] sm:$0xff]
        %v573 = vld [vmem:[%s1 + $0x110] sm:$0xff]
        %v574 = vld [vmem:[%s1 + $0x118] sm:$0xff]
        %v575 = vld [vmem:[%s1 + $0x120] sm:$0xff]
        %v576 = vld [vmem:[%s1 + $0x128] sm:$0xff]
        %v577 = vld [vmem:[%s1 + $0x130] sm:$0xff]
        %v578 = vld [vmem:[%s1 + $0x138] sm:$0xff]
        %v579 = vld [vmem:[%s1 + $0x140] sm:$0xff]
        %v580 = vld [vmem:[%s1 + $0x148] sm:$0xff]
        %v581 = vld [vmem:[%s1 + $0x150] sm:$0xff]
        %v582 = vld [vmem:[%s1 + $0x158] sm:$0xff]
        %v583 = vld [vmem:[%s1 + $0x160] sm:$0xff]
        %v584 = vld [vmem:[%s1 + $0x168] sm:$0xff]
        %v585 = vld [vmem:[%s1 + $0x170] sm:$0xff]
        %v586 = vld [vmem:[%s1 + $0x178] sm:$0xff]
        %v587 = vld [vmem:[%s1 + $0x180] sm:$0xff]
        %v588 = vld [vmem:[%s1 + $0x188] sm:$0xff]
        %v589 = vld [vmem:[%s1 + $0x190] sm:$0xff]
        %v590 = vld [vmem:[%s1 + $0x198] sm:$0xff]
        %v591 = vld [vmem:[%s1 + $0x1a0] sm:$0xff]
        %v592 = vld [vmem:[%s1 + $0x1a8] sm:$0xff]
        %v593 = vld [vmem:[%s1 + $0x1b0] sm:$0xff]
        %v594 = vld [vmem:[%s1 + $0x1b8] sm:$0xff]
        %v595 = vld [vmem:[%s1 + $0x1c0] sm:$0xff]
        %v596 = vld [vmem:[%s1 + $0x1c8] sm:$0xff]
        %v597 = vld [vmem:[%s1 + $0x1d0] sm:$0xff]
        %v598 = vld [vmem:[%s1 + $0x1d8] sm:$0xff]
        %v599 = vld [vmem:[%s1 + $0x1e0] sm:$0xff]
        %v600 = vld [vmem:[%s1 + $0x1e8] sm:$0xff]
        %v601 = vld [vmem:[%s1 + $0x1f0] sm:$0xff]
        %v602 = vld [vmem:[%s1 + $0x1f8] sm:$0xff]
        %v603 = vld [vmem:[%s4] sm:$0x3]
        %v605 = vlaneseq
        %v606 = vshrl.u32 %v605, 7
        %v607 = vsub.s32 0, %v606
        %v608 = vrot.slane %v603, %v607
        %v609 = vlaneseq
        %v610 = vshrl.u32 %v609, 7
        %v611 = vsub.s32 1, %v610
        %v612 = vrot.slane %v603, %v611
        %615 = vmatprep.subr.mxu0 %v540
        %616 = vmatpush1.msra.mxu0 %v539
        %617 = vmatprep.subr.mxu0 %v542
        %618 = vmatpush1.msra.mxu0 %v541
        %619 = vmatprep.subr.mxu0 %v544
        %620 = vmatpush1.msra.mxu0 %v543
        %621 = vmatprep.subr.mxu0 %v546
        %622 = vmatpush1.msra.mxu0 %v545
        %623 = vmatprep.subr.mxu0 %v548
        %624 = vmatpush1.msra.mxu0 %v547
        %625 = vmatprep.subr.mxu0 %v550
        %626 = vmatpush1.msra.mxu0 %v549
        %627 = vmatprep.subr.mxu0 %v552
        %628 = vmatpush1.msra.mxu0 %v551
        %629 = vmatprep.subr.mxu0 %v554
        %630 = vmatpush1.msra.mxu0 %v553
        %631 = vmatprep.subr.mxu0 %v556
        %632 = vmatpush1.msra.mxu0 %v555
        %633 = vmatprep.subr.mxu0 %v558
        %634 = vmatpush1.msra.mxu0 %v557
        %635 = vmatprep.subr.mxu0 %v560
        %636 = vmatpush1.msra.mxu0 %v559
        %637 = vmatprep.subr.mxu0 %v562
        %638 = vmatpush1.msra.mxu0 %v561
        %639 = vmatprep.subr.mxu0 %v564
        %640 = vmatpush1.msra.mxu0 %v563
        %641 = vmatprep.subr.mxu0 %v566
        %642 = vmatpush1.msra.mxu0 %v565
        %643 = vmatprep.subr.mxu0 %v568
        %644 = vmatpush1.msra.mxu0 %v567
        %645 = vmatprep.subr.mxu0 %v570
        %646 = vmatpush1.msra.mxu0 %v569
        %647 = vmatprep.subr.mxu0 %v572
        %648 = vmatpush1.msra.mxu0 %v571
        %649 = vmatprep.subr.mxu0 %v574
        %650 = vmatpush1.msra.mxu0 %v573
        %651 = vmatprep.subr.mxu0 %v576
        %652 = vmatpush1.msra.mxu0 %v575
        %653 = vmatprep.subr.mxu0 %v578
        %654 = vmatpush1.msra.mxu0 %v577
        %655 = vmatprep.subr.mxu0 %v580
        %656 = vmatpush1.msra.mxu0 %v579
        %657 = vmatprep.subr.mxu0 %v582
        %658 = vmatpush1.msra.mxu0 %v581
        %659 = vmatprep.subr.mxu0 %v584
        %660 = vmatpush1.msra.mxu0 %v583
        %661 = vmatprep.subr.mxu0 %v586
        %662 = vmatpush1.msra.mxu0 %v585
        %663 = vmatprep.subr.mxu0 %v588
        %664 = vmatpush1.msra.mxu0 %v587
        %665 = vmatprep.subr.mxu0 %v590
        %666 = vmatpush1.msra.mxu0 %v589
        %667 = vmatprep.subr.mxu0 %v592
        %668 = vmatpush1.msra.mxu0 %v591
        %669 = vmatprep.subr.mxu0 %v594
        %670 = vmatpush1.msra.mxu0 %v593
        %671 = vmatprep.subr.mxu0 %v596
        %672 = vmatpush1.msra.mxu0 %v595
        %673 = vmatprep.subr.mxu0 %v598
        %674 = vmatpush1.msra.mxu0 %v597
        %675 = vmatprep.subr.mxu0 %v600
        %676 = vmatpush1.msra.mxu0 %v599
        %677 = vmatprep.subr.mxu0 %v602
        %678 = vmatpush1.msra.mxu0 %v601
        %679 = vmatprep.mubr.f32.mxu0 %v532
        %680 = vmatmul.mubr.f32.gmra.mrb[0].mxu0 %v531
        %v681 = vpop.f32.mrb[0].mxu0
        %v682 = vadd.f32 %v608, %v681
        %v683 = vpop.f32.mrb[0].mxu0
        %v684 = vadd.f32 %v612, %v683
        %685 = vmatprep.mubr.f32.mxu0 %v534
        %686 = vmatmul.mubr.f32.gmra.mrb[0].mxu0 %v533
        %v687 = vpop.f32.mrb[0].mxu0
        %v688 = vadd.f32 %v608, %v687
        %v689 = vpop.f32.mrb[0].mxu0
        %v690 = vadd.f32 %v612, %v689
        %691 = vmatprep.mubr.f32.mxu0 %v536
        %692 = vmatmul.mubr.f32.gmra.mrb[0].mxu0 %v535
        %v693 = vpop.f32.mrb[0].mxu0
        %v694 = vadd.f32 %v608, %v693
        %v695 = vpop.f32.mrb[0].mxu0
        %v696 = vadd.f32 %v612, %v695
        %697 = vmatprep.mubr.f32.mxu0 %v538
        %698 = vmatmul.mubr.f32.gmra.mrb[0].mxu0 %v537
        %v699 = vpop.f32.mrb[0].mxu0
        %v700 = vadd.f32 %v608, %v699
        %v701 = vpop.f32.mrb[0].mxu0
        %v702 = vadd.f32 %v612, %v701
        %703 = vdwg.mxu0
        %704 = vst [vmem:[#allocation2] sm:$0xff] %v682
        %705 = vst [vmem:[#allocation2 + $0x8] sm:$0xff] %v684
        %706 = vst [vmem:[#allocation2 + $0x10] sm:$0xff] %v688
        %707 = vst [vmem:[#allocation2 + $0x18] sm:$0xff] %v690
        %708 = vst [vmem:[#allocation2 + $0x20] sm:$0xff] %v694
        %709 = vst [vmem:[#allocation2 + $0x28] sm:$0xff] %v696
        %710 = vst [vmem:[#allocation2 + $0x30] sm:$0xff] %v700
        %711 = vst [vmem:[#allocation2 + $0x38] sm:$0xff] %v702
        %v712 = vld [vmem:[#allocation3] sm:$0xff]
        %v713 = vld [vmem:[#allocation3 + $0x8] sm:$0xff]
        %v714 = vld [vmem:[#allocation3 + $0x10] sm:$0xff]
        %v715 = vld [vmem:[#allocation3 + $0x18] sm:$0xff]
        %v716 = vld [vmem:[#allocation3 + $0x20] sm:$0xff]
        %v717 = vld [vmem:[#allocation3 + $0x28] sm:$0xff]
        %v718 = vld [vmem:[#allocation3 + $0x30] sm:$0xff]
        %v719 = vld [vmem:[#allocation3 + $0x38] sm:$0xff]
        %v720 = vld [vmem:[#allocation5] sm:$0xff]
        %v721 = vld [vmem:[#allocation5 + $0x8] sm:$0xff]
        %v722 = vld [vmem:[#allocation5 + $0x10] sm:$0xff]
        %v723 = vld [vmem:[#allocation5 + $0x18] sm:$0xff]
        %v724 = vld [vmem:[#allocation5 + $0x20] sm:$0xff]
        %v725 = vld [vmem:[#allocation5 + $0x28] sm:$0xff]
        %v726 = vld [vmem:[#allocation5 + $0x30] sm:$0xff]
        %v727 = vld [vmem:[#allocation5 + $0x38] sm:$0xff]
        %v728 = vld [vmem:[%s5] sm:$0xff]
        %v729 = vld [vmem:[%s5 + $0x8] sm:$0xff]
        %v730 = vld [vmem:[%s5 + $0x10] sm:$0xff]
        %v731 = vld [vmem:[%s5 + $0x18] sm:$0xff]
        %v732 = vld [vmem:[%s5 + $0x20] sm:$0xff]
        %v733 = vld [vmem:[%s5 + $0x28] sm:$0xff]
        %v734 = vld [vmem:[%s5 + $0x30] sm:$0xff]
        %v735 = vld [vmem:[%s5 + $0x38] sm:$0xff]
        %v736 = vld [vmem:[%s5 + $0x40] sm:$0xff]
        %v737 = vld [vmem:[%s5 + $0x48] sm:$0xff]
        %v738 = vld [vmem:[%s5 + $0x50] sm:$0xff]
        %v739 = vld [vmem:[%s5 + $0x58] sm:$0xff]
        %v740 = vld [vmem:[%s5 + $0x60] sm:$0xff]
        %v741 = vld [vmem:[%s5 + $0x68] sm:$0xff]
        %v742 = vld [vmem:[%s5 + $0x70] sm:$0xff]
        %v743 = vld [vmem:[%s5 + $0x78] sm:$0xff]
        %v744 = vld [vmem:[%s5 + $0x80] sm:$0xff]
        %v745 = vld [vmem:[%s5 + $0x88] sm:$0xff]
        %v746 = vld [vmem:[%s5 + $0x90] sm:$0xff]
        %v747 = vld [vmem:[%s5 + $0x98] sm:$0xff]
        %v748 = vld [vmem:[%s5 + $0xa0] sm:$0xff]
        %v749 = vld [vmem:[%s5 + $0xa8] sm:$0xff]
        %v750 = vld [vmem:[%s5 + $0xb0] sm:$0xff]
        %v751 = vld [vmem:[%s5 + $0xb8] sm:$0xff]
        %v752 = vld [vmem:[%s5 + $0xc0] sm:$0xff]
        %v753 = vld [vmem:[%s5 + $0xc8] sm:$0xff]
        %v754 = vld [vmem:[%s5 + $0xd0] sm:$0xff]
        %v755 = vld [vmem:[%s5 + $0xd8] sm:$0xff]
        %v756 = vld [vmem:[%s5 + $0xe0] sm:$0xff]
        %v757 = vld [vmem:[%s5 + $0xe8] sm:$0xff]
        %v758 = vld [vmem:[%s5 + $0xf0] sm:$0xff]
        %v759 = vld [vmem:[%s5 + $0xf8] sm:$0xff]
        %v760 = vld [vmem:[#allocation7] sm:$0xff]
        %v761 = vld [vmem:[#allocation7 + $0x8] sm:$0xff]
        %v762 = vld [vmem:[%s7] sm:$0xff]
        %v763 = vld [vmem:[%s7 + $0x8] sm:$0xff]
        %v764 = vld [vmem:[%s7 + $0x10] sm:$0xff]
        %v765 = vld [vmem:[%s7 + $0x18] sm:$0xff]
        %v766 = vld [vmem:[%s7 + $0x20] sm:$0xff]
        %v767 = vld [vmem:[%s7 + $0x28] sm:$0xff]
        %v768 = vld [vmem:[%s7 + $0x30] sm:$0xff]
        %v769 = vld [vmem:[%s7 + $0x38] sm:$0xff]
        %v770 = vld [vmem:[%s7 + $0x40] sm:$0xff]
        %v771 = vld [vmem:[%s7 + $0x48] sm:$0xff]
        %v772 = vld [vmem:[%s7 + $0x50] sm:$0xff]
        %v773 = vld [vmem:[%s7 + $0x58] sm:$0xff]
        %v774 = vld [vmem:[%s7 + $0x60] sm:$0xff]
        %v775 = vld [vmem:[%s7 + $0x68] sm:$0xff]
        %v776 = vld [vmem:[%s7 + $0x70] sm:$0xff]
        %v777 = vld [vmem:[%s7 + $0x78] sm:$0xff]
        %v778 = vld [vmem:[%s7 + $0x80] sm:$0xff]
        %v779 = vld [vmem:[%s7 + $0x88] sm:$0xff]
        %v780 = vld [vmem:[%s7 + $0x90] sm:$0xff]
        %v781 = vld [vmem:[%s7 + $0x98] sm:$0xff]
        %v782 = vld [vmem:[%s7 + $0xa0] sm:$0xff]
        %v783 = vld [vmem:[%s7 + $0xa8] sm:$0xff]
        %v784 = vld [vmem:[%s7 + $0xb0] sm:$0xff]
        %v785 = vld [vmem:[%s7 + $0xb8] sm:$0xff]
        %v786 = vld [vmem:[%s7 + $0xc0] sm:$0xff]
        %v787 = vld [vmem:[%s7 + $0xc8] sm:$0xff]
        %v788 = vld [vmem:[%s7 + $0xd0] sm:$0xff]
        %v789 = vld [vmem:[%s7 + $0xd8] sm:$0xff]
        %v790 = vld [vmem:[%s7 + $0xe0] sm:$0xff]
        %v791 = vld [vmem:[%s7 + $0xe8] sm:$0xff]
        %v792 = vld [vmem:[%s7 + $0xf0] sm:$0xff]
        %v793 = vld [vmem:[%s7 + $0xf8] sm:$0xff]
        %v794 = vld [vmem:[%s8] sm:$0xff]
        %v795 = vld [vmem:[%s8 + $0x8] sm:$0xff]
        %v796 = vld [vmem:[%s8 + $0x10] sm:$0xff]
        %v797 = vld [vmem:[%s8 + $0x18] sm:$0xff]
        %v798 = vld [vmem:[#allocation8] sm:$0xff]
        %v799 = vld [vmem:[#allocation8 + $0x8] sm:$0xff]
        %v800 = vld [vmem:[#allocation8 + $0x10] sm:$0xff]
        %v801 = vld [vmem:[#allocation8 + $0x18] sm:$0xff]
        %v802 = vld [vmem:[%s10] sm:$0x1]
        loop: start=0, step=1, limit=8
        $region93: #{tpu_custom_call.1} parent=75 // loop_pre_header
          _
        $region94: #{tpu_custom_call.1} parent=75 // loop_header
          %s804 = sphi 0, %s808
          %p805 = scmp.ge.s32.totalorder %s804, 8
          %v809 = vphi 0.0, %v1688
          %v810 = vphi 0.0, %v1689
          %v811 = vphi 0.0, %v1690
          %v812 = vphi 0.0, %v1691
          %v813 = vphi 0.0, %v1664
          %v814 = vphi 0.0, %v1665
          %v815 = vphi 0.0, %v1666
          %v816 = vphi 0.0, %v1667
          %v817 = vphi 0.0, %v1400
          %v818 = vphi 0.0, %v1401
          %v819 = vphi 0.0, %v1402
          %v820 = vphi 0.0, %v1403
        $region95: #{tpu_custom_call.1} parent=75 // loop_header_branch
          %807 = sbr.rel (%p805) target = $region99
        $region96: #{tpu_custom_call.1} parent=75 // loop_body
          %v821 = vld [vmem:[#allocation2] sm:$0xff]
          %v822 = vld [vmem:[#allocation2 + $0x8] sm:$0xff]
          %v823 = vld [vmem:[#allocation2 + $0x10] sm:$0xff]
          %v824 = vld [vmem:[#allocation2 + $0x18] sm:$0xff]
          %v825 = vld [vmem:[#allocation2 + $0x20] sm:$0xff]
          %v826 = vld [vmem:[#allocation2 + $0x28] sm:$0xff]
          %v827 = vld [vmem:[#allocation2 + $0x30] sm:$0xff]
          %v828 = vld [vmem:[#allocation2 + $0x38] sm:$0xff]
          %833 = vrot.lane.b32.xlu0 %v809, 32
          %v834 = vpop.permute.xlu0 %833
          %835 = vrot.lane.b32.xlu0 %v810, 32
          %v836 = vpop.permute.xlu0 %835
          %837 = vrot.lane.b32.xlu0 %v811, 32
          %v838 = vpop.permute.xlu0 %837
          %839 = vrot.lane.b32.xlu0 %v812, 32
          %v840 = vpop.permute.xlu0 %839
          %vm841 = vcmask 261120
          %v842 = vsel %vm841, %v834, 0
          %v844 = vsel %vm841, %v836, 0
          %v846 = vsel %vm841, %v838, 0
          %v848 = vsel %vm841, %v840, 0
          %850 = vmatprep.subr.mxu0 %v713
          %851 = vmatpush1.msra.mxu0 %v712
          %852 = vmatprep.subr.mxu0 %v715
          %853 = vmatpush1.msra.mxu0 %v714
          %854 = vmatprep.subr.mxu0 %v717
          %855 = vmatpush1.msra.mxu0 %v716
          %856 = vmatprep.subr.mxu0 %v719
          %857 = vmatpush1.msra.mxu0 %v718
          %858 = vmatprep.subr.mxu0 0.0
          %859 = vmatpush1.msra.mxu0 0.0
          %860 = vmatprep.subr.mxu0 0.0
          %861 = vmatpush1.msra.mxu0 0.0
          %862 = vmatprep.subr.mxu0 0.0
          %863 = vmatpush1.msra.mxu0 0.0
          %864 = vmatprep.subr.mxu0 0.0
          %865 = vmatpush1.msra.mxu0 0.0
          %866 = vmatprep.subr.mxu0 0.0
          %867 = vmatpush1.msra.mxu0 0.0
          %868 = vmatprep.subr.mxu0 0.0
          %869 = vmatpush1.msra.mxu0 0.0
          %870 = vmatprep.subr.mxu0 0.0
          %871 = vmatpush1.msra.mxu0 0.0
          %872 = vmatprep.subr.mxu0 0.0
          %873 = vmatpush1.msra.mxu0 0.0
          %874 = vmatprep.subr.mxu0 0.0
          %875 = vmatpush1.msra.mxu0 0.0
          %876 = vmatprep.subr.mxu0 0.0
          %877 = vmatpush1.msra.mxu0 0.0
          %878 = vmatprep.subr.mxu0 0.0
          %879 = vmatpush1.msra.mxu0 0.0
          %880 = vmatprep.subr.mxu0 0.0
          %881 = vmatpush1.msra.mxu0 0.0
          %882 = vmatprep.subr.mxu0 0.0
          %883 = vmatpush1.msra.mxu0 0.0
          %884 = vmatprep.subr.mxu0 0.0
          %885 = vmatpush1.msra.mxu0 0.0
          %886 = vmatprep.subr.mxu0 0.0
          %887 = vmatpush1.msra.mxu0 0.0
          %888 = vmatprep.subr.mxu0 0.0
          %889 = vmatpush1.msra.mxu0 0.0
          %890 = vmatprep.subr.mxu0 0.0
          %891 = vmatpush1.msra.mxu0 0.0
          %892 = vmatprep.subr.mxu0 0.0
          %893 = vmatpush1.msra.mxu0 0.0
          %894 = vmatprep.subr.mxu0 0.0
          %895 = vmatpush1.msra.mxu0 0.0
          %896 = vmatprep.subr.mxu0 0.0
          %897 = vmatpush1.msra.mxu0 0.0
          %898 = vmatprep.subr.mxu0 0.0
          %899 = vmatpush1.msra.mxu0 0.0
          %900 = vmatprep.subr.mxu0 0.0
          %901 = vmatpush1.msra.mxu0 0.0
          %902 = vmatprep.subr.mxu0 0.0
          %903 = vmatpush1.msra.mxu0 0.0
          %904 = vmatprep.subr.mxu0 0.0
          %905 = vmatpush1.msra.mxu0 0.0
          %906 = vmatprep.subr.mxu0 0.0
          %907 = vmatpush1.msra.mxu0 0.0
          %908 = vmatprep.subr.mxu0 0.0
          %909 = vmatpush1.msra.mxu0 0.0
          %910 = vmatprep.subr.mxu0 0.0
          %911 = vmatpush1.msra.mxu0 0.0
          %912 = vmatprep.subr.mxu0 0.0
          %913 = vmatpush1.msra.mxu0 0.0
          %914 = vmatprep.mubr.f32.mxu0 0.0
          %915 = vmatmul.mubr.f32.gmra.mrb[0].mxu0 %v842
          %v916 = vpop.f32.mrb[0].mxu0
          %v917 = vadd.f32 0.0, %v916
          %v918 = vpop.f32.mrb[0].mxu0
          %v919 = vadd.f32 0.0, %v918
          %920 = vmatprep.mubr.f32.mxu0 0.0
          %921 = vmatmul.mubr.f32.gmra.mrb[0].mxu0 %v844
          %v922 = vpop.f32.mrb[0].mxu0
          %v923 = vadd.f32 0.0, %v922
          %v924 = vpop.f32.mrb[0].mxu0
          %v925 = vadd.f32 0.0, %v924
          %926 = vmatprep.mubr.f32.mxu0 0.0
          %927 = vmatmul.mubr.f32.gmra.mrb[0].mxu0 %v846
          %v928 = vpop.f32.mrb[0].mxu0
          %v929 = vadd.f32 0.0, %v928
          %v930 = vpop.f32.mrb[0].mxu0
          %v931 = vadd.f32 0.0, %v930
          %932 = vmatprep.mubr.f32.mxu0 0.0
          %933 = vmatmul.mubr.f32.gmra.mrb[0].mxu0 %v848
          %v934 = vpop.f32.mrb[0].mxu0
          %v935 = vadd.f32 0.0, %v934
          %v936 = vpop.f32.mrb[0].mxu0
          %v937 = vadd.f32 0.0, %v936
          %938 = vdwg.mxu0
          %v939 = vadd.f32 %v821, %v917
          %v940 = vadd.f32 %v822, %v919
          %v941 = vadd.f32 %v823, %v923
          %v942 = vadd.f32 %v824, %v925
          %v943 = vadd.f32 %v825, %v929
          %v944 = vadd.f32 %v826, %v931
          %v945 = vadd.f32 %v827, %v935
          %v946 = vadd.f32 %v828, %v937
          %951 = vrot.lane.b32.xlu0 %v813, 96
          %v952 = vpop.permute.xlu0 %951
          %953 = vrot.lane.b32.xlu0 %v814, 96
          %v954 = vpop.permute.xlu0 %953
          %955 = vrot.lane.b32.xlu0 %v815, 96
          %v956 = vpop.permute.xlu0 %955
          %957 = vrot.lane.b32.xlu0 %v816, 96
          %v958 = vpop.permute.xlu0 %957
          %v959 = vsel %vm841, %v952, 0
          %v961 = vsel %vm841, %v954, 0
          %v963 = vsel %vm841, %v956, 0
          %v965 = vsel %vm841, %v958, 0
          %967 = vmatprep.subr.mxu0 %v721
          %968 = vmatpush1.msra.mxu0 %v720
          %969 = vmatprep.subr.mxu0 %v723
          %970 = vmatpush1.msra.mxu0 %v722
          %971 = vmatprep.subr.mxu0 %v725
          %972 = vmatpush1.msra.mxu0 %v724
          %973 = vmatprep.subr.mxu0 %v727
          %974 = vmatpush1.msra.mxu0 %v726
          %975 = vmatprep.subr.mxu0 0.0
          %976 = vmatpush1.msra.mxu0 0.0
          %977 = vmatprep.subr.mxu0 0.0
          %978 = vmatpush1.msra.mxu0 0.0
          %979 = vmatprep.subr.mxu0 0.0
          %980 = vmatpush1.msra.mxu0 0.0
          %981 = vmatprep.subr.mxu0 0.0
          %982 = vmatpush1.msra.mxu0 0.0
          %983 = vmatprep.subr.mxu0 0.0
          %984 = vmatpush1.msra.mxu0 0.0
          %985 = vmatprep.subr.mxu0 0.0
          %986 = vmatpush1.msra.mxu0 0.0
          %987 = vmatprep.subr.mxu0 0.0
          %988 = vmatpush1.msra.mxu0 0.0
          %989 = vmatprep.subr.mxu0 0.0
          %990 = vmatpush1.msra.mxu0 0.0
          %991 = vmatprep.subr.mxu0 0.0
          %992 = vmatpush1.msra.mxu0 0.0
          %993 = vmatprep.subr.mxu0 0.0
          %994 = vmatpush1.msra.mxu0 0.0
          %995 = vmatprep.subr.mxu0 0.0
          %996 = vmatpush1.msra.mxu0 0.0
          %997 = vmatprep.subr.mxu0 0.0
          %998 = vmatpush1.msra.mxu0 0.0
          %999 = vmatprep.subr.mxu0 0.0
          %1000 = vmatpush1.msra.mxu0 0.0
          %1001 = vmatprep.subr.mxu0 0.0
          %1002 = vmatpush1.msra.mxu0 0.0
          %1003 = vmatprep.subr.mxu0 0.0
          %1004 = vmatpush1.msra.mxu0 0.0
          %1005 = vmatprep.subr.mxu0 0.0
          %1006 = vmatpush1.msra.mxu0 0.0
          %1007 = vmatprep.subr.mxu0 0.0
          %1008 = vmatpush1.msra.mxu0 0.0
          %1009 = vmatprep.subr.mxu0 0.0
          %1010 = vmatpush1.msra.mxu0 0.0
          %1011 = vmatprep.subr.mxu0 0.0
          %1012 = vmatpush1.msra.mxu0 0.0
          %1013 = vmatprep.subr.mxu0 0.0
          %1014 = vmatpush1.msra.mxu0 0.0
          %1015 = vmatprep.subr.mxu0 0.0
          %1016 = vmatpush1.msra.mxu0 0.0
          %1017 = vmatprep.subr.mxu0 0.0
          %1018 = vmatpush1.msra.mxu0 0.0
          %1019 = vmatprep.subr.mxu0 0.0
          %1020 = vmatpush1.msra.mxu0 0.0
          %1021 = vmatprep.subr.mxu0 0.0
          %1022 = vmatpush1.msra.mxu0 0.0
          %1023 = vmatprep.subr.mxu0 0.0
          %1024 = vmatpush1.msra.mxu0 0.0
          %1025 = vmatprep.subr.mxu0 0.0
          %1026 = vmatpush1.msra.mxu0 0.0
          %1027 = vmatprep.subr.mxu0 0.0
          %1028 = vmatpush1.msra.mxu0 0.0
          %1029 = vmatprep.subr.mxu0 0.0
          %1030 = vmatpush1.msra.mxu0 0.0
          %1031 = vmatprep.mubr.f32.mxu0 0.0
          %1032 = vmatmul.mubr.f32.gmra.mrb[0].mxu0 %v959
          %v1033 = vpop.f32.mrb[0].mxu0
          %v1034 = vadd.f32 0.0, %v1033
          %v1035 = vpop.f32.mrb[0].mxu0
          %v1036 = vadd.f32 0.0, %v1035
          %1037 = vmatprep.mubr.f32.mxu0 0.0
          %1038 = vmatmul.mubr.f32.gmra.mrb[0].mxu0 %v961
          %v1039 = vpop.f32.mrb[0].mxu0
          %v1040 = vadd.f32 0.0, %v1039
          %v1041 = vpop.f32.mrb[0].mxu0
          %v1042 = vadd.f32 0.0, %v1041
          %1043 = vmatprep.mubr.f32.mxu0 0.0
          %1044 = vmatmul.mubr.f32.gmra.mrb[0].mxu0 %v963
          %v1045 = vpop.f32.mrb[0].mxu0
          %v1046 = vadd.f32 0.0, %v1045
          %v1047 = vpop.f32.mrb[0].mxu0
          %v1048 = vadd.f32 0.0, %v1047
          %1049 = vmatprep.mubr.f32.mxu0 0.0
          %1050 = vmatmul.mubr.f32.gmra.mrb[0].mxu0 %v965
          %v1051 = vpop.f32.mrb[0].mxu0
          %v1052 = vadd.f32 0.0, %v1051
          %v1053 = vpop.f32.mrb[0].mxu0
          %v1054 = vadd.f32 0.0, %v1053
          %1055 = vdwg.mxu0
          %v1056 = vadd.f32 %v939, %v1034
          %v1057 = vadd.f32 %v940, %v1036
          %v1058 = vadd.f32 %v941, %v1040
          %v1059 = vadd.f32 %v942, %v1042
          %v1060 = vadd.f32 %v943, %v1046
          %v1061 = vadd.f32 %v944, %v1048
          %v1062 = vadd.f32 %v945, %v1052
          %v1063 = vadd.f32 %v946, %v1054
          %v1064 = vtanh.pop %v1056
          %v1065 = vtanh.pop %v1057
          %v1066 = vtanh.pop %v1058
          %v1067 = vtanh.pop %v1059
          %v1068 = vtanh.pop %v1060
          %v1069 = vtanh.pop %v1061
          %v1070 = vtanh.pop %v1062
          %v1071 = vtanh.pop %v1063
          %1072 = vmatprep.subr.mxu0 0.0
          %1073 = vmatpush1.msra.mxu0 %v728
          %1074 = vmatprep.subr.mxu0 0.0
          %1075 = vmatpush1.msra.mxu0 %v729
          %1076 = vmatprep.subr.mxu0 0.0
          %1077 = vmatpush1.msra.mxu0 %v730
          %1078 = vmatprep.subr.mxu0 0.0
          %1079 = vmatpush1.msra.mxu0 %v731
          %1080 = vmatprep.subr.mxu0 0.0
          %1081 = vmatpush1.msra.mxu0 %v732
          %1082 = vmatprep.subr.mxu0 0.0
          %1083 = vmatpush1.msra.mxu0 %v733
          %1084 = vmatprep.subr.mxu0 0.0
          %1085 = vmatpush1.msra.mxu0 %v734
          %1086 = vmatprep.subr.mxu0 0.0
          %1087 = vmatpush1.msra.mxu0 %v735
          %1088 = vmatprep.subr.mxu0 0.0
          %1089 = vmatpush1.msra.mxu0 %v736
          %1090 = vmatprep.subr.mxu0 0.0
          %1091 = vmatpush1.msra.mxu0 %v737
          %1092 = vmatprep.subr.mxu0 0.0
          %1093 = vmatpush1.msra.mxu0 %v738
          %1094 = vmatprep.subr.mxu0 0.0
          %1095 = vmatpush1.msra.mxu0 %v739
          %1096 = vmatprep.subr.mxu0 0.0
          %1097 = vmatpush1.msra.mxu0 %v740
          %1098 = vmatprep.subr.mxu0 0.0
          %1099 = vmatpush1.msra.mxu0 %v741
          %1100 = vmatprep.subr.mxu0 0.0
          %1101 = vmatpush1.msra.mxu0 %v742
          %1102 = vmatprep.subr.mxu0 0.0
          %1103 = vmatpush1.msra.mxu0 %v743
          %1104 = vmatprep.subr.mxu0 0.0
          %1105 = vmatpush1.msra.mxu0 %v744
          %1106 = vmatprep.subr.mxu0 0.0
          %1107 = vmatpush1.msra.mxu0 %v745
          %1108 = vmatprep.subr.mxu0 0.0
          %1109 = vmatpush1.msra.mxu0 %v746
          %1110 = vmatprep.subr.mxu0 0.0
          %1111 = vmatpush1.msra.mxu0 %v747
          %1112 = vmatprep.subr.mxu0 0.0
          %1113 = vmatpush1.msra.mxu0 %v748
          %1114 = vmatprep.subr.mxu0 0.0
          %1115 = vmatpush1.msra.mxu0 %v749
          %1116 = vmatprep.subr.mxu0 0.0
          %1117 = vmatpush1.msra.mxu0 %v750
          %1118 = vmatprep.subr.mxu0 0.0
          %1119 = vmatpush1.msra.mxu0 %v751
          %1120 = vmatprep.subr.mxu0 0.0
          %1121 = vmatpush1.msra.mxu0 %v752
          %1122 = vmatprep.subr.mxu0 0.0
          %1123 = vmatpush1.msra.mxu0 %v753
          %1124 = vmatprep.subr.mxu0 0.0
          %1125 = vmatpush1.msra.mxu0 %v754
          %1126 = vmatprep.subr.mxu0 0.0
          %1127 = vmatpush1.msra.mxu0 %v755
          %1128 = vmatprep.subr.mxu0 0.0
          %1129 = vmatpush1.msra.mxu0 %v756
          %1130 = vmatprep.subr.mxu0 0.0
          %1131 = vmatpush1.msra.mxu0 %v757
          %1132 = vmatprep.subr.mxu0 0.0
          %1133 = vmatpush1.msra.mxu0 %v758
          %1134 = vmatprep.subr.mxu0 0.0
          %1135 = vmatpush1.msra.mxu0 %v759
          %1136 = vmatprep.mubr.f32.mxu0 %v1065
          %1137 = vmatmul.mubr.f32.gmra.mrb[0].mxu0 %v1064
          %v1138 = vpop.f32.mrb[0].mxu0
          %v1139 = vadd.f32 0.0, %v1138
          %v1140 = vpop.f32.mrb[0].mxu0
          %1141 = vmatprep.mubr.f32.mxu0 %v1067
          %1142 = vmatmul.mubr.f32.gmra.mrb[0].mxu0 %v1066
          %v1143 = vpop.f32.mrb[0].mxu0
          %v1144 = vadd.f32 0.0, %v1143
          %v1145 = vpop.f32.mrb[0].mxu0
          %1146 = vmatprep.mubr.f32.mxu0 %v1069
          %1147 = vmatmul.mubr.f32.gmra.mrb[0].mxu0 %v1068
          %v1148 = vpop.f32.mrb[0].mxu0
          %v1149 = vadd.f32 0.0, %v1148
          %v1150 = vpop.f32.mrb[0].mxu0
          %1151 = vmatprep.mubr.f32.mxu0 %v1071
          %1152 = vmatmul.mubr.f32.gmra.mrb[0].mxu0 %v1070
          %v1153 = vpop.f32.mrb[0].mxu0
          %v1154 = vadd.f32 0.0, %v1153
          %v1155 = vpop.f32.mrb[0].mxu0
          %1156 = vdwg.mxu0
          %vm1157 = vcmask 64512
          %v1158 = vsel %vm1157, %v1139, -inf
          %1159 = vmax.xlane.f32.xlu0 %v1158
          %v1160 = vpop.xlane.xlu0 %1159
          %v1161 = vsel %vm1157, %v1144, -inf
          %1162 = vmax.xlane.f32.xlu0 %v1161
          %v1163 = vpop.xlane.xlu0 %1162
          %v1164 = vsel %vm1157, %v1149, -inf
          %1165 = vmax.xlane.f32.xlu0 %v1164
          %v1166 = vpop.xlane.xlu0 %1165
          %v1167 = vsel %vm1157, %v1154, -inf
          %1168 = vmax.xlane.f32.xlu0 %v1167
          %v1169 = vpop.xlane.xlu0 %1168
          %v1170 = vsub.f32 %v1139, %v1160
          %v1171 = vsub.f32 %v1144, %v1163
          %v1172 = vsub.f32 %v1149, %v1166
          %v1173 = vsub.f32 %v1154, %v1169
          %v1174 = vmul.f32 %v1170, 1.442695
          %v1175 = vpow.pop %v1174
          %v1176 = vmul.f32 %v1171, 1.442695
          %v1177 = vpow.pop %v1176
          %v1178 = vmul.f32 %v1172, 1.442695
          %v1179 = vpow.pop %v1178
          %v1180 = vmul.f32 %v1173, 1.442695
          %v1181 = vpow.pop %v1180
          %v1182 = vsel %vm1157, %v1175, 0.0
          %1183 = vadd.xlane.f32.xlu0 %v1182
          %v1184 = vpop.xlane.xlu0 %1183
          %v1185 = vsel %vm1157, %v1177, 0.0
          %1186 = vadd.xlane.f32.xlu0 %v1185
          %v1187 = vpop.xlane.xlu0 %1186
          %v1188 = vsel %vm1157, %v1179, 0.0
          %1189 = vadd.xlane.f32.xlu0 %v1188
          %v1190 = vpop.xlane.xlu0 %1189
          %v1191 = vsel %vm1157, %v1181, 0.0
          %1192 = vadd.xlane.f32.xlu0 %v1191
          %v1193 = vpop.xlane.xlu0 %1192
          %v1194 = vrcp.pop %v1184
          %v1195 = vrcp.pop %v1187
          %v1196 = vrcp.pop %v1190
          %v1197 = vrcp.pop %v1193
          %v1199 = vsel %vm1157, %v1175, 0
          %v1202 = vsel %vm1157, %v1177, 0
          %v1205 = vsel %vm1157, %v1179, 0
          %v1208 = vsel %vm1157, %v1181, 0
          %1210 = vmatprep.subr.mxu0 %v761
          %1211 = vmatpush1.msra.mxu0 %v760
          %1212 = vmatprep.subr.mxu0 0.0
          %1213 = vmatpush1.msra.mxu0 0.0
          %1214 = vmatprep.subr.mxu0 0.0
          %1215 = vmatpush1.msra.mxu0 0.0
          %1216 = vmatprep.subr.mxu0 0.0
          %1217 = vmatpush1.msra.mxu0 0.0
          %1218 = vmatprep.subr.mxu0 0.0
          %1219 = vmatpush1.msra.mxu0 0.0
          %1220 = vmatprep.subr.mxu0 0.0
          %1221 = vmatpush1.msra.mxu0 0.0
          %1222 = vmatprep.subr.mxu0 0.0
          %1223 = vmatpush1.msra.mxu0 0.0
          %1224 = vmatprep.subr.mxu0 0.0
          %1225 = vmatpush1.msra.mxu0 0.0
          %1226 = vmatprep.subr.mxu0 0.0
          %1227 = vmatpush1.msra.mxu0 0.0
          %1228 = vmatprep.subr.mxu0 0.0
          %1229 = vmatpush1.msra.mxu0 0.0
          %1230 = vmatprep.subr.mxu0 0.0
          %1231 = vmatpush1.msra.mxu0 0.0
          %1232 = vmatprep.subr.mxu0 0.0
          %1233 = vmatpush1.msra.mxu0 0.0
          %1234 = vmatprep.subr.mxu0 0.0
          %1235 = vmatpush1.msra.mxu0 0.0
          %1236 = vmatprep.subr.mxu0 0.0
          %1237 = vmatpush1.msra.mxu0 0.0
          %1238 = vmatprep.subr.mxu0 0.0
          %1239 = vmatpush1.msra.mxu0 0.0
          %1240 = vmatprep.subr.mxu0 0.0
          %1241 = vmatpush1.msra.mxu0 0.0
          %1242 = vmatprep.subr.mxu0 0.0
          %1243 = vmatpush1.msra.mxu0 0.0
          %1244 = vmatprep.subr.mxu0 0.0
          %1245 = vmatpush1.msra.mxu0 0.0
          %1246 = vmatprep.subr.mxu0 0.0
          %1247 = vmatpush1.msra.mxu0 0.0
          %1248 = vmatprep.subr.mxu0 0.0
          %1249 = vmatpush1.msra.mxu0 0.0
          %1250 = vmatprep.subr.mxu0 0.0
          %1251 = vmatpush1.msra.mxu0 0.0
          %1252 = vmatprep.subr.mxu0 0.0
          %1253 = vmatpush1.msra.mxu0 0.0
          %1254 = vmatprep.subr.mxu0 0.0
          %1255 = vmatpush1.msra.mxu0 0.0
          %1256 = vmatprep.subr.mxu0 0.0
          %1257 = vmatpush1.msra.mxu0 0.0
          %1258 = vmatprep.subr.mxu0 0.0
          %1259 = vmatpush1.msra.mxu0 0.0
          %1260 = vmatprep.subr.mxu0 0.0
          %1261 = vmatpush1.msra.mxu0 0.0
          %1262 = vmatprep.subr.mxu0 0.0
          %1263 = vmatpush1.msra.mxu0 0.0
          %1264 = vmatprep.subr.mxu0 0.0
          %1265 = vmatpush1.msra.mxu0 0.0
          %1266 = vmatprep.subr.mxu0 0.0
          %1267 = vmatpush1.msra.mxu0 0.0
          %1268 = vmatprep.subr.mxu0 0.0
          %1269 = vmatpush1.msra.mxu0 0.0
          %1270 = vmatprep.subr.mxu0 0.0
          %1271 = vmatpush1.msra.mxu0 0.0
          %1272 = vmatprep.subr.mxu0 0.0
          %1273 = vmatpush1.msra.mxu0 0.0
          %1274 = vmatprep.mubr.f32.mxu0 0.0
          %1275 = vmatmul.mubr.f32.gmra.mrb[0].mxu0 %v1199
          %v1276 = vpop.f32.mrb[0].mxu0
          %v1277 = vadd.f32 0.0, %v1276
          %v1278 = vpop.f32.mrb[0].mxu0
          %v1279 = vadd.f32 0.0, %v1278
          %1280 = vmatprep.mubr.f32.mxu0 0.0
          %1281 = vmatmul.mubr.f32.gmra.mrb[0].mxu0 %v1202
          %v1282 = vpop.f32.mrb[0].mxu0
          %v1283 = vadd.f32 0.0, %v1282
          %v1284 = vpop.f32.mrb[0].mxu0
          %v1285 = vadd.f32 0.0, %v1284
          %1286 = vmatprep.mubr.f32.mxu0 0.0
          %1287 = vmatmul.mubr.f32.gmra.mrb[0].mxu0 %v1205
          %v1288 = vpop.f32.mrb[0].mxu0
          %v1289 = vadd.f32 0.0, %v1288
          %v1290 = vpop.f32.mrb[0].mxu0
          %v1291 = vadd.f32 0.0, %v1290
          %1292 = vmatprep.mubr.f32.mxu0 0.0
          %1293 = vmatmul.mubr.f32.gmra.mrb[0].mxu0 %v1208
          %v1294 = vpop.f32.mrb[0].mxu0
          %v1295 = vadd.f32 0.0, %v1294
          %v1296 = vpop.f32.mrb[0].mxu0
          %v1297 = vadd.f32 0.0, %v1296
          %1298 = vdwg.mxu0
          %v1299 = vld [vmem:[%s523] sm:$0xff]
          %v1300 = vld [vmem:[%s523 + $0x8] sm:$0xff]
          %v1301 = vld [vmem:[%s523 + $0x10] sm:$0xff]
          %v1302 = vld [vmem:[%s523 + $0x18] sm:$0xff]
          %v1303 = vld [vmem:[%s523 + $0x20] sm:$0xff]
          %v1304 = vld [vmem:[%s523 + $0x28] sm:$0xff]
          %v1305 = vld [vmem:[%s523 + $0x30] sm:$0xff]
          %v1306 = vld [vmem:[%s523 + $0x38] sm:$0xff]
          %v1307 = vmul.f32 %v1277, %v1299
          %v1308 = vmul.f32 %v1279, %v1300
          %v1309 = vmul.f32 %v1283, %v1301
          %v1310 = vmul.f32 %v1285, %v1302
          %v1311 = vmul.f32 %v1289, %v1303
          %v1312 = vmul.f32 %v1291, %v1304
          %v1313 = vmul.f32 %v1295, %v1305
          %v1314 = vmul.f32 %v1297, %v1306
          %1315 = vmatprep.subr.mxu0 0.0
          %1316 = vmatpush1.msra.mxu0 %v762
          %1317 = vmatprep.subr.mxu0 0.0
          %1318 = vmatpush1.msra.mxu0 %v763
          %1319 = vmatprep.subr.mxu0 0.0
          %1320 = vmatpush1.msra.mxu0 %v764
          %1321 = vmatprep.subr.mxu0 0.0
          %1322 = vmatpush1.msra.mxu0 %v765
          %1323 = vmatprep.subr.mxu0 0.0
          %1324 = vmatpush1.msra.mxu0 %v766
          %1325 = vmatprep.subr.mxu0 0.0
          %1326 = vmatpush1.msra.mxu0 %v767
          %1327 = vmatprep.subr.mxu0 0.0
          %1328 = vmatpush1.msra.mxu0 %v768
          %1329 = vmatprep.subr.mxu0 0.0
          %1330 = vmatpush1.msra.mxu0 %v769
          %1331 = vmatprep.subr.mxu0 0.0
          %1332 = vmatpush1.msra.mxu0 %v770
          %1333 = vmatprep.subr.mxu0 0.0
          %1334 = vmatpush1.msra.mxu0 %v771
          %1335 = vmatprep.subr.mxu0 0.0
          %1336 = vmatpush1.msra.mxu0 %v772
          %1337 = vmatprep.subr.mxu0 0.0
          %1338 = vmatpush1.msra.mxu0 %v773
          %1339 = vmatprep.subr.mxu0 0.0
          %1340 = vmatpush1.msra.mxu0 %v774
          %1341 = vmatprep.subr.mxu0 0.0
          %1342 = vmatpush1.msra.mxu0 %v775
          %1343 = vmatprep.subr.mxu0 0.0
          %1344 = vmatpush1.msra.mxu0 %v776
          %1345 = vmatprep.subr.mxu0 0.0
          %1346 = vmatpush1.msra.mxu0 %v777
          %1347 = vmatprep.subr.mxu0 0.0
          %1348 = vmatpush1.msra.mxu0 %v778
          %1349 = vmatprep.subr.mxu0 0.0
          %1350 = vmatpush1.msra.mxu0 %v779
          %1351 = vmatprep.subr.mxu0 0.0
          %1352 = vmatpush1.msra.mxu0 %v780
          %1353 = vmatprep.subr.mxu0 0.0
          %1354 = vmatpush1.msra.mxu0 %v781
          %1355 = vmatprep.subr.mxu0 0.0
          %1356 = vmatpush1.msra.mxu0 %v782
          %1357 = vmatprep.subr.mxu0 0.0
          %1358 = vmatpush1.msra.mxu0 %v783
          %1359 = vmatprep.subr.mxu0 0.0
          %1360 = vmatpush1.msra.mxu0 %v784
          %1361 = vmatprep.subr.mxu0 0.0
          %1362 = vmatpush1.msra.mxu0 %v785
          %1363 = vmatprep.subr.mxu0 0.0
          %1364 = vmatpush1.msra.mxu0 %v786
          %1365 = vmatprep.subr.mxu0 0.0
          %1366 = vmatpush1.msra.mxu0 %v787
          %1367 = vmatprep.subr.mxu0 0.0
          %1368 = vmatpush1.msra.mxu0 %v788
          %1369 = vmatprep.subr.mxu0 0.0
          %1370 = vmatpush1.msra.mxu0 %v789
          %1371 = vmatprep.subr.mxu0 0.0
          %1372 = vmatpush1.msra.mxu0 %v790
          %1373 = vmatprep.subr.mxu0 0.0
          %1374 = vmatpush1.msra.mxu0 %v791
          %1375 = vmatprep.subr.mxu0 0.0
          %1376 = vmatpush1.msra.mxu0 %v792
          %1377 = vmatprep.subr.mxu0 0.0
          %1378 = vmatpush1.msra.mxu0 %v793
          %1379 = vmatprep.mubr.f32.mxu0 %v1308
          %1380 = vmatmul.mubr.f32.gmra.mrb[0].mxu0 %v1307
          %v1381 = vpop.f32.mrb[0].mxu0
          %v1382 = vadd.f32 0.0, %v1381
          %v1383 = vpop.f32.mrb[0].mxu0
          %1384 = vmatprep.mubr.f32.mxu0 %v1310
          %1385 = vmatmul.mubr.f32.gmra.mrb[0].mxu0 %v1309
          %v1386 = vpop.f32.mrb[0].mxu0
          %v1387 = vadd.f32 0.0, %v1386
          %v1388 = vpop.f32.mrb[0].mxu0
          %1389 = vmatprep.mubr.f32.mxu0 %v1312
          %1390 = vmatmul.mubr.f32.gmra.mrb[0].mxu0 %v1311
          %v1391 = vpop.f32.mrb[0].mxu0
          %v1392 = vadd.f32 0.0, %v1391
          %v1393 = vpop.f32.mrb[0].mxu0
          %1394 = vmatprep.mubr.f32.mxu0 %v1314
          %1395 = vmatmul.mubr.f32.gmra.mrb[0].mxu0 %v1313
          %v1396 = vpop.f32.mrb[0].mxu0
          %v1397 = vadd.f32 0.0, %v1396
          %v1398 = vpop.f32.mrb[0].mxu0
          %1399 = vdwg.mxu0
          %v1400 = vmul.f32 %v1382, %v1194
          %v1401 = vmul.f32 %v1387, %v1195
          %v1402 = vmul.f32 %v1392, %v1196
          %v1403 = vmul.f32 %v1397, %v1197
          %1404 = vmatprep.subr.mxu0 0.0
          %1405 = vmatpush1.msra.mxu0 %v798
          %1406 = vmatprep.subr.mxu0 0.0
          %1407 = vmatpush1.msra.mxu0 %v799
          %1408 = vmatprep.subr.mxu0 0.0
          %1409 = vmatpush1.msra.mxu0 %v800
          %1410 = vmatprep.subr.mxu0 0.0
          %1411 = vmatpush1.msra.mxu0 %v801
          %1412 = vmatprep.subr.mxu0 0.0
          %1413 = vmatpush1.msra.mxu0 0.0
          %1414 = vmatprep.subr.mxu0 0.0
          %1415 = vmatpush1.msra.mxu0 0.0
          %1416 = vmatprep.subr.mxu0 0.0
          %1417 = vmatpush1.msra.mxu0 0.0
          %1418 = vmatprep.subr.mxu0 0.0
          %1419 = vmatpush1.msra.mxu0 0.0
          %1420 = vmatprep.subr.mxu0 0.0
          %1421 = vmatpush1.msra.mxu0 0.0
          %1422 = vmatprep.subr.mxu0 0.0
          %1423 = vmatpush1.msra.mxu0 0.0
          %1424 = vmatprep.subr.mxu0 0.0
          %1425 = vmatpush1.msra.mxu0 0.0
          %1426 = vmatprep.subr.mxu0 0.0
          %1427 = vmatpush1.msra.mxu0 0.0
          %1428 = vmatprep.subr.mxu0 0.0
          %1429 = vmatpush1.msra.mxu0 0.0
          %1430 = vmatprep.subr.mxu0 0.0
          %1431 = vmatpush1.msra.mxu0 0.0
          %1432 = vmatprep.subr.mxu0 0.0
          %1433 = vmatpush1.msra.mxu0 0.0
          %1434 = vmatprep.subr.mxu0 0.0
          %1435 = vmatpush1.msra.mxu0 0.0
          %1436 = vmatprep.subr.mxu0 0.0
          %1437 = vmatpush1.msra.mxu0 0.0
          %1438 = vmatprep.subr.mxu0 0.0
          %1439 = vmatpush1.msra.mxu0 0.0
          %1440 = vmatprep.subr.mxu0 0.0
          %1441 = vmatpush1.msra.mxu0 0.0
          %1442 = vmatprep.subr.mxu0 0.0
          %1443 = vmatpush1.msra.mxu0 0.0
          %1444 = vmatprep.subr.mxu0 0.0
          %1445 = vmatpush1.msra.mxu0 0.0
          %1446 = vmatprep.subr.mxu0 0.0
          %1447 = vmatpush1.msra.mxu0 0.0
          %1448 = vmatprep.subr.mxu0 0.0
          %1449 = vmatpush1.msra.mxu0 0.0
          %1450 = vmatprep.subr.mxu0 0.0
          %1451 = vmatpush1.msra.mxu0 0.0
          %1452 = vmatprep.subr.mxu0 0.0
          %1453 = vmatpush1.msra.mxu0 0.0
          %1454 = vmatprep.subr.mxu0 0.0
          %1455 = vmatpush1.msra.mxu0 0.0
          %1456 = vmatprep.subr.mxu0 0.0
          %1457 = vmatpush1.msra.mxu0 0.0
          %1458 = vmatprep.subr.mxu0 0.0
          %1459 = vmatpush1.msra.mxu0 0.0
          %1460 = vmatprep.subr.mxu0 0.0
          %1461 = vmatpush1.msra.mxu0 0.0
          %1462 = vmatprep.subr.mxu0 0.0
          %1463 = vmatpush1.msra.mxu0 0.0
          %1464 = vmatprep.subr.mxu0 0.0
          %1465 = vmatpush1.msra.mxu0 0.0
          %1466 = vmatprep.subr.mxu0 0.0
          %1467 = vmatpush1.msra.mxu0 0.0
          %1468 = vmatprep.mubr.f32.mxu0 0.0
          %1469 = vmatmul.mubr.f32.gmra.mrb[0].mxu0 %v842
          %v1470 = vpop.f32.mrb[0].mxu0
          %v1471 = vadd.f32 0.0, %v1470
          %v1472 = vpop.f32.mrb[0].mxu0
          %1473 = vmatprep.mubr.f32.mxu0 0.0
          %1474 = vmatmul.mubr.f32.gmra.mrb[0].mxu0 %v844
          %v1475 = vpop.f32.mrb[0].mxu0
          %v1476 = vadd.f32 0.0, %v1475
          %v1477 = vpop.f32.mrb[0].mxu0
          %1478 = vmatprep.mubr.f32.mxu0 0.0
          %1479 = vmatmul.mubr.f32.gmra.mrb[0].mxu0 %v846
          %v1480 = vpop.f32.mrb[0].mxu0
          %v1481 = vadd.f32 0.0, %v1480
          %v1482 = vpop.f32.mrb[0].mxu0
          %1483 = vmatprep.mubr.f32.mxu0 0.0
          %1484 = vmatmul.mubr.f32.gmra.mrb[0].mxu0 %v848
          %v1485 = vpop.f32.mrb[0].mxu0
          %v1486 = vadd.f32 0.0, %v1485
          %v1487 = vpop.f32.mrb[0].mxu0
          %1488 = vdwg.mxu0
          %v1490 = vsel %vm841, %v1400, 0
          %v1493 = vsel %vm841, %v1401, 0
          %v1496 = vsel %vm841, %v1402, 0
          %v1499 = vsel %vm841, %v1403, 0
          %1501 = vmatprep.subr.mxu0 0.0
          %1502 = vmatpush1.msra.mxu0 %v794
          %1503 = vmatprep.subr.mxu0 0.0
          %1504 = vmatpush1.msra.mxu0 %v795
          %1505 = vmatprep.subr.mxu0 0.0
          %1506 = vmatpush1.msra.mxu0 %v796
          %1507 = vmatprep.subr.mxu0 0.0
          %1508 = vmatpush1.msra.mxu0 %v797
          %1509 = vmatprep.subr.mxu0 0.0
          %1510 = vmatpush1.msra.mxu0 0.0
          %1511 = vmatprep.subr.mxu0 0.0
          %1512 = vmatpush1.msra.mxu0 0.0
          %1513 = vmatprep.subr.mxu0 0.0
          %1514 = vmatpush1.msra.mxu0 0.0
          %1515 = vmatprep.subr.mxu0 0.0
          %1516 = vmatpush1.msra.mxu0 0.0
          %1517 = vmatprep.subr.mxu0 0.0
          %1518 = vmatpush1.msra.mxu0 0.0
          %1519 = vmatprep.subr.mxu0 0.0
          %1520 = vmatpush1.msra.mxu0 0.0
          %1521 = vmatprep.subr.mxu0 0.0
          %1522 = vmatpush1.msra.mxu0 0.0
          %1523 = vmatprep.subr.mxu0 0.0
          %1524 = vmatpush1.msra.mxu0 0.0
          %1525 = vmatprep.subr.mxu0 0.0
          %1526 = vmatpush1.msra.mxu0 0.0
          %1527 = vmatprep.subr.mxu0 0.0
          %1528 = vmatpush1.msra.mxu0 0.0
          %1529 = vmatprep.subr.mxu0 0.0
          %1530 = vmatpush1.msra.mxu0 0.0
          %1531 = vmatprep.subr.mxu0 0.0
          %1532 = vmatpush1.msra.mxu0 0.0
          %1533 = vmatprep.subr.mxu0 0.0
          %1534 = vmatpush1.msra.mxu0 0.0
          %1535 = vmatprep.subr.mxu0 0.0
          %1536 = vmatpush1.msra.mxu0 0.0
          %1537 = vmatprep.subr.mxu0 0.0
          %1538 = vmatpush1.msra.mxu0 0.0
          %1539 = vmatprep.subr.mxu0 0.0
          %1540 = vmatpush1.msra.mxu0 0.0
          %1541 = vmatprep.subr.mxu0 0.0
          %1542 = vmatpush1.msra.mxu0 0.0
          %1543 = vmatprep.subr.mxu0 0.0
          %1544 = vmatpush1.msra.mxu0 0.0
          %1545 = vmatprep.subr.mxu0 0.0
          %1546 = vmatpush1.msra.mxu0 0.0
          %1547 = vmatprep.subr.mxu0 0.0
          %1548 = vmatpush1.msra.mxu0 0.0
          %1549 = vmatprep.subr.mxu0 0.0
          %1550 = vmatpush1.msra.mxu0 0.0
          %1551 = vmatprep.subr.mxu0 0.0
          %1552 = vmatpush1.msra.mxu0 0.0
          %1553 = vmatprep.subr.mxu0 0.0
          %1554 = vmatpush1.msra.mxu0 0.0
          %1555 = vmatprep.subr.mxu0 0.0
          %1556 = vmatpush1.msra.mxu0 0.0
          %1557 = vmatprep.subr.mxu0 0.0
          %1558 = vmatpush1.msra.mxu0 0.0
          %1559 = vmatprep.subr.mxu0 0.0
          %1560 = vmatpush1.msra.mxu0 0.0
          %1561 = vmatprep.subr.mxu0 0.0
          %1562 = vmatpush1.msra.mxu0 0.0
          %1563 = vmatprep.subr.mxu0 0.0
          %1564 = vmatpush1.msra.mxu0 0.0
          %1565 = vmatprep.mubr.f32.mxu0 0.0
          %1566 = vmatmul.mubr.f32.gmra.mrb[0].mxu0 %v1490
          %v1567 = vpop.f32.mrb[0].mxu0
          %v1568 = vadd.f32 %v1471, %v1567
          %v1569 = vpop.f32.mrb[0].mxu0
          %1570 = vmatprep.mubr.f32.mxu0 0.0
          %1571 = vmatmul.mubr.f32.gmra.mrb[0].mxu0 %v1493
          %v1572 = vpop.f32.mrb[0].mxu0
          %v1573 = vadd.f32 %v1476, %v1572
          %v1574 = vpop.f32.mrb[0].mxu0
          %1575 = vmatprep.mubr.f32.mxu0 0.0
          %1576 = vmatmul.mubr.f32.gmra.mrb[0].mxu0 %v1496
          %v1577 = vpop.f32.mrb[0].mxu0
          %v1578 = vadd.f32 %v1481, %v1577
          %v1579 = vpop.f32.mrb[0].mxu0
          %1580 = vmatprep.mubr.f32.mxu0 0.0
          %1581 = vmatmul.mubr.f32.gmra.mrb[0].mxu0 %v1499
          %v1582 = vpop.f32.mrb[0].mxu0
          %v1583 = vadd.f32 %v1486, %v1582
          %v1584 = vpop.f32.mrb[0].mxu0
          %1585 = vdwg.mxu0
          %v1587 = vlaneseq
          %v1588 = vshrl.u32 %v1587, 7
          %v1589 = vsub.s32 0, %v1588
          %v1590 = vrot.slane %v802, %v1589
          %v1592 = vadd.f32 %v1568, %v1590
          %v1593 = vadd.f32 %v1573, %v1590
          %v1594 = vadd.f32 %v1578, %v1590
          %v1595 = vadd.f32 %v1583, %v1590
          %v1596 = vxor.u32 %v1592, 2147483648
          %v1597 = vxor.u32 %v1593, 2147483648
          %v1598 = vxor.u32 %v1594, 2147483648
          %v1599 = vxor.u32 %v1595, 2147483648
          %v1600 = vmul.f32 %v1596, 1.442695
          %v1601 = vpow.pop %v1600
          %v1602 = vmul.f32 %v1597, 1.442695
          %v1603 = vpow.pop %v1602
          %v1604 = vmul.f32 %v1598, 1.442695
          %v1605 = vpow.pop %v1604
          %v1606 = vmul.f32 %v1599, 1.442695
          %v1607 = vpow.pop %v1606
          %v1608 = vadd.f32 %v1601, 1.0
          %v1609 = vadd.f32 %v1603, 1.0
          %v1610 = vadd.f32 %v1605, 1.0
          %v1611 = vadd.f32 %v1607, 1.0
          %v1612 = vrcp.pop %v1608
          %v1613 = vmul.f32 1.0, %v1612
          %v1614 = vrcp.pop %v1609
          %v1615 = vmul.f32 1.0, %v1614
          %v1616 = vrcp.pop %v1610
          %v1617 = vmul.f32 1.0, %v1616
          %v1618 = vrcp.pop %v1611
          %v1619 = vmul.f32 1.0, %v1618
          %v1620 = vtanh.pop %v1592
          %v1621 = vtanh.pop %v1593
          %v1622 = vtanh.pop %v1594
          %v1623 = vtanh.pop %v1595
          %v1624 = vmul.f32 %v1613, %v813
          %v1625 = vmul.f32 %v1615, %v814
          %v1626 = vmul.f32 %v1617, %v815
          %v1627 = vmul.f32 %v1619, %v816
          %1632 = vrot.lane.b32.xlu0 %v1620, 64
          %v1633 = vpop.permute.xlu0 %1632
          %1634 = vrot.lane.b32.xlu0 %v1621, 64
          %v1635 = vpop.permute.xlu0 %1634
          %1636 = vrot.lane.b32.xlu0 %v1622, 64
          %v1637 = vpop.permute.xlu0 %1636
          %1638 = vrot.lane.b32.xlu0 %v1623, 64
          %v1639 = vpop.permute.xlu0 %1638
          %v1644 = vmul.f32 %v1613, %v1633
          %v1645 = vmul.f32 %v1615, %v1635
          %v1646 = vmul.f32 %v1617, %v1637
          %v1647 = vmul.f32 %v1619, %v1639
          %1652 = vrot.lane.b32.xlu0 %v1644, 32
          %v1653 = vpop.permute.xlu0 %1652
          %1654 = vrot.lane.b32.xlu0 %v1645, 32
          %v1655 = vpop.permute.xlu0 %1654
          %1656 = vrot.lane.b32.xlu0 %v1646, 32
          %v1657 = vpop.permute.xlu0 %1656
          %1658 = vrot.lane.b32.xlu0 %v1647, 32
          %v1659 = vpop.permute.xlu0 %1658
          %v1664 = vadd.f32 %v1624, %v1653
          %v1665 = vadd.f32 %v1625, %v1655
          %v1666 = vadd.f32 %v1626, %v1657
          %v1667 = vadd.f32 %v1627, %v1659
          %v1668 = vtanh.pop %v1664
          %v1669 = vtanh.pop %v1665
          %v1670 = vtanh.pop %v1666
          %v1671 = vtanh.pop %v1667
          %1676 = vrot.lane.b32.xlu0 %v1668, 64
          %v1677 = vpop.permute.xlu0 %1676
          %1678 = vrot.lane.b32.xlu0 %v1669, 64
          %v1679 = vpop.permute.xlu0 %1678
          %1680 = vrot.lane.b32.xlu0 %v1670, 64
          %v1681 = vpop.permute.xlu0 %1680
          %1682 = vrot.lane.b32.xlu0 %v1671, 64
          %v1683 = vpop.permute.xlu0 %1682
          %v1688 = vmul.f32 %v1613, %v1677
          %v1689 = vmul.f32 %v1615, %v1679
          %v1690 = vmul.f32 %v1617, %v1681
          %v1691 = vmul.f32 %v1619, %v1683
        $region97: #{tpu_custom_call.1} parent=75 // loop_footer
          %s808 = sadd.s32 1, %s804
        $region98: #{tpu_custom_call.1} parent=75 // loop_footer_branch
          %803 = sbr.rel target = $region94
        $region99: #{tpu_custom_call.1} parent=75 // loop_exit
          _
        %v1692 = vld [vmem:[%s11] sm:$0xff]
        %v1693 = vld [vmem:[%s11 + $0x8] sm:$0xff]
        %v1694 = vld [vmem:[%s11 + $0x10] sm:$0xff]
        %v1695 = vld [vmem:[%s11 + $0x18] sm:$0xff]
        %v1696 = vld [vmem:[%s12] sm:$0xff]
        %v1697 = vld [vmem:[%s12 + $0x8] sm:$0xff]
        %v1698 = vld [vmem:[%s12 + $0x10] sm:$0xff]
        %v1699 = vld [vmem:[%s12 + $0x18] sm:$0xff]
        %vm1700 = vcmask 261120
        %v1702 = vsel %vm1700, %v817, 0
        %v1705 = vsel %vm1700, %v818, 0
        %v1708 = vsel %vm1700, %v819, 0
        %v1711 = vsel %vm1700, %v820, 0
        %1713 = vmatprep.subr.mxu0 0.0
        %1714 = vmatpush1.msra.mxu0 %v1696
        %1715 = vmatprep.subr.mxu0 0.0
        %1716 = vmatpush1.msra.mxu0 %v1697
        %1717 = vmatprep.subr.mxu0 0.0
        %1718 = vmatpush1.msra.mxu0 %v1698
        %1719 = vmatprep.subr.mxu0 0.0
        %1720 = vmatpush1.msra.mxu0 %v1699
        %1721 = vmatprep.subr.mxu0 0.0
        %1722 = vmatpush1.msra.mxu0 0.0
        %1723 = vmatprep.subr.mxu0 0.0
        %1724 = vmatpush1.msra.mxu0 0.0
        %1725 = vmatprep.subr.mxu0 0.0
        %1726 = vmatpush1.msra.mxu0 0.0
        %1727 = vmatprep.subr.mxu0 0.0
        %1728 = vmatpush1.msra.mxu0 0.0
        %1729 = vmatprep.subr.mxu0 0.0
        %1730 = vmatpush1.msra.mxu0 0.0
        %1731 = vmatprep.subr.mxu0 0.0
        %1732 = vmatpush1.msra.mxu0 0.0
        %1733 = vmatprep.subr.mxu0 0.0
        %1734 = vmatpush1.msra.mxu0 0.0
        %1735 = vmatprep.subr.mxu0 0.0
        %1736 = vmatpush1.msra.mxu0 0.0
        %1737 = vmatprep.subr.mxu0 0.0
        %1738 = vmatpush1.msra.mxu0 0.0
        %1739 = vmatprep.subr.mxu0 0.0
        %1740 = vmatpush1.msra.mxu0 0.0
        %1741 = vmatprep.subr.mxu0 0.0
        %1742 = vmatpush1.msra.mxu0 0.0
        %1743 = vmatprep.subr.mxu0 0.0
        %1744 = vmatpush1.msra.mxu0 0.0
        %1745 = vmatprep.subr.mxu0 0.0
        %1746 = vmatpush1.msra.mxu0 0.0
        %1747 = vmatprep.subr.mxu0 0.0
        %1748 = vmatpush1.msra.mxu0 0.0
        %1749 = vmatprep.subr.mxu0 0.0
        %1750 = vmatpush1.msra.mxu0 0.0
        %1751 = vmatprep.subr.mxu0 0.0
        %1752 = vmatpush1.msra.mxu0 0.0
        %1753 = vmatprep.subr.mxu0 0.0
        %1754 = vmatpush1.msra.mxu0 0.0
        %1755 = vmatprep.subr.mxu0 0.0
        %1756 = vmatpush1.msra.mxu0 0.0
        %1757 = vmatprep.subr.mxu0 0.0
        %1758 = vmatpush1.msra.mxu0 0.0
        %1759 = vmatprep.subr.mxu0 0.0
        %1760 = vmatpush1.msra.mxu0 0.0
        %1761 = vmatprep.subr.mxu0 0.0
        %1762 = vmatpush1.msra.mxu0 0.0
        %1763 = vmatprep.subr.mxu0 0.0
        %1764 = vmatpush1.msra.mxu0 0.0
        %1765 = vmatprep.subr.mxu0 0.0
        %1766 = vmatpush1.msra.mxu0 0.0
        %1767 = vmatprep.subr.mxu0 0.0
        %1768 = vmatpush1.msra.mxu0 0.0
        %1769 = vmatprep.subr.mxu0 0.0
        %1770 = vmatpush1.msra.mxu0 0.0
        %1771 = vmatprep.subr.mxu0 0.0
        %1772 = vmatpush1.msra.mxu0 0.0
        %1773 = vmatprep.subr.mxu0 0.0
        %1774 = vmatpush1.msra.mxu0 0.0
        %1775 = vmatprep.subr.mxu0 0.0
        %1776 = vmatpush1.msra.mxu0 0.0
        %1777 = vmatprep.mubr.f32.mxu0 0.0
        %1778 = vmatmul.mubr.f32.gmra.mrb[0].mxu0 %v1702
        %v1779 = vpop.f32.mrb[0].mxu0
        %v1780 = vadd.f32 0.0, %v1779
        %v1781 = vpop.f32.mrb[0].mxu0
        %1782 = vmatprep.mubr.f32.mxu0 0.0
        %1783 = vmatmul.mubr.f32.gmra.mrb[0].mxu0 %v1705
        %v1784 = vpop.f32.mrb[0].mxu0
        %v1785 = vadd.f32 0.0, %v1784
        %v1786 = vpop.f32.mrb[0].mxu0
        %1787 = vmatprep.mubr.f32.mxu0 0.0
        %1788 = vmatmul.mubr.f32.gmra.mrb[0].mxu0 %v1708
        %v1789 = vpop.f32.mrb[0].mxu0
        %v1790 = vadd.f32 0.0, %v1789
        %v1791 = vpop.f32.mrb[0].mxu0
        %1792 = vmatprep.mubr.f32.mxu0 0.0
        %1793 = vmatmul.mubr.f32.gmra.mrb[0].mxu0 %v1711
        %v1794 = vpop.f32.mrb[0].mxu0
        %v1795 = vadd.f32 0.0, %v1794
        %v1796 = vpop.f32.mrb[0].mxu0
        %1797 = vdwg.mxu0
        %1802 = vrot.lane.b32.xlu0 %v809, 32
        %v1803 = vpop.permute.xlu0 %1802
        %1804 = vrot.lane.b32.xlu0 %v810, 32
        %v1805 = vpop.permute.xlu0 %1804
        %1806 = vrot.lane.b32.xlu0 %v811, 32
        %v1807 = vpop.permute.xlu0 %1806
        %1808 = vrot.lane.b32.xlu0 %v812, 32
        %v1809 = vpop.permute.xlu0 %1808
        %v1810 = vsel %vm1700, %v1803, 0
        %v1812 = vsel %vm1700, %v1805, 0
        %v1814 = vsel %vm1700, %v1807, 0
        %v1816 = vsel %vm1700, %v1809, 0
        %1818 = vmatprep.subr.mxu0 0.0
        %1819 = vmatpush1.msra.mxu0 %v1692
        %1820 = vmatprep.subr.mxu0 0.0
        %1821 = vmatpush1.msra.mxu0 %v1693
        %1822 = vmatprep.subr.mxu0 0.0
        %1823 = vmatpush1.msra.mxu0 %v1694
        %1824 = vmatprep.subr.mxu0 0.0
        %1825 = vmatpush1.msra.mxu0 %v1695
        %1826 = vmatprep.subr.mxu0 0.0
        %1827 = vmatpush1.msra.mxu0 0.0
        %1828 = vmatprep.subr.mxu0 0.0
        %1829 = vmatpush1.msra.mxu0 0.0
        %1830 = vmatprep.subr.mxu0 0.0
        %1831 = vmatpush1.msra.mxu0 0.0
        %1832 = vmatprep.subr.mxu0 0.0
        %1833 = vmatpush1.msra.mxu0 0.0
        %1834 = vmatprep.subr.mxu0 0.0
        %1835 = vmatpush1.msra.mxu0 0.0
        %1836 = vmatprep.subr.mxu0 0.0
        %1837 = vmatpush1.msra.mxu0 0.0
        %1838 = vmatprep.subr.mxu0 0.0
        %1839 = vmatpush1.msra.mxu0 0.0
        %1840 = vmatprep.subr.mxu0 0.0
        %1841 = vmatpush1.msra.mxu0 0.0
        %1842 = vmatprep.subr.mxu0 0.0
        %1843 = vmatpush1.msra.mxu0 0.0
        %1844 = vmatprep.subr.mxu0 0.0
        %1845 = vmatpush1.msra.mxu0 0.0
        %1846 = vmatprep.subr.mxu0 0.0
        %1847 = vmatpush1.msra.mxu0 0.0
        %1848 = vmatprep.subr.mxu0 0.0
        %1849 = vmatpush1.msra.mxu0 0.0
        %1850 = vmatprep.subr.mxu0 0.0
        %1851 = vmatpush1.msra.mxu0 0.0
        %1852 = vmatprep.subr.mxu0 0.0
        %1853 = vmatpush1.msra.mxu0 0.0
        %1854 = vmatprep.subr.mxu0 0.0
        %1855 = vmatpush1.msra.mxu0 0.0
        %1856 = vmatprep.subr.mxu0 0.0
        %1857 = vmatpush1.msra.mxu0 0.0
        %1858 = vmatprep.subr.mxu0 0.0
        %1859 = vmatpush1.msra.mxu0 0.0
        %1860 = vmatprep.subr.mxu0 0.0
        %1861 = vmatpush1.msra.mxu0 0.0
        %1862 = vmatprep.subr.mxu0 0.0
        %1863 = vmatpush1.msra.mxu0 0.0
        %1864 = vmatprep.subr.mxu0 0.0
        %1865 = vmatpush1.msra.mxu0 0.0
        %1866 = vmatprep.subr.mxu0 0.0
        %1867 = vmatpush1.msra.mxu0 0.0
        %1868 = vmatprep.subr.mxu0 0.0
        %1869 = vmatpush1.msra.mxu0 0.0
        %1870 = vmatprep.subr.mxu0 0.0
        %1871 = vmatpush1.msra.mxu0 0.0
        %1872 = vmatprep.subr.mxu0 0.0
        %1873 = vmatpush1.msra.mxu0 0.0
        %1874 = vmatprep.subr.mxu0 0.0
        %1875 = vmatpush1.msra.mxu0 0.0
        %1876 = vmatprep.subr.mxu0 0.0
        %1877 = vmatpush1.msra.mxu0 0.0
        %1878 = vmatprep.subr.mxu0 0.0
        %1879 = vmatpush1.msra.mxu0 0.0
        %1880 = vmatprep.subr.mxu0 0.0
        %1881 = vmatpush1.msra.mxu0 0.0
        %1882 = vmatprep.mubr.f32.mxu0 0.0
        %1883 = vmatmul.mubr.f32.gmra.mrb[0].mxu0 %v1810
        %v1884 = vpop.f32.mrb[0].mxu0
        %v1885 = vadd.f32 %v1780, %v1884
        %v1886 = vpop.f32.mrb[0].mxu0
        %1887 = vmatprep.mubr.f32.mxu0 0.0
        %1888 = vmatmul.mubr.f32.gmra.mrb[0].mxu0 %v1812
        %v1889 = vpop.f32.mrb[0].mxu0
        %v1890 = vadd.f32 %v1785, %v1889
        %v1891 = vpop.f32.mrb[0].mxu0
        %1892 = vmatprep.mubr.f32.mxu0 0.0
        %1893 = vmatmul.mubr.f32.gmra.mrb[0].mxu0 %v1814
        %v1894 = vpop.f32.mrb[0].mxu0
        %v1895 = vadd.f32 %v1790, %v1894
        %v1896 = vpop.f32.mrb[0].mxu0
        %1897 = vmatprep.mubr.f32.mxu0 0.0
        %1898 = vmatmul.mubr.f32.gmra.mrb[0].mxu0 %v1816
        %v1899 = vpop.f32.mrb[0].mxu0
        %v1900 = vadd.f32 %v1795, %v1899
        %v1901 = vpop.f32.mrb[0].mxu0
        %1902 = vdwg.mxu0
        %v1903 = vld [vmem:[%s13] sm:$0x1]
        %v1905 = vlaneseq
        %v1906 = vshrl.u32 %v1905, 7
        %v1907 = vsub.s32 0, %v1906
        %v1908 = vrot.slane %v1903, %v1907
        %v1910 = vadd.f32 %v1885, %v1908
        %v1911 = vadd.f32 %v1890, %v1908
        %v1912 = vadd.f32 %v1895, %v1908
        %v1913 = vadd.f32 %v1900, %v1908
        %vm1914 = vcmask 31744
        %1915 = vst.msk [vmem:[%s529] sm:$0xff] %vm1914, %v1910
        %1916 = vst.msk [vmem:[%s529 + $0x8] sm:$0xff] %vm1914, %v1911
        %1917 = vst.msk [vmem:[%s529 + $0x10] sm:$0xff] %vm1914, %v1912
        %1918 = vst.msk [vmem:[%s529 + $0x18] sm:$0xff] %vm1914, %v1913
        %s1919 = smul.u32 4, %s28
        %p1920 = scmp.lt.s32.totalorder %s1919, 7
        %s1921 = scalar_select %p1920, %s1919, 7
        %s1922 = smul.addr %s1921, 8
        %s1923 = scalar_lea.vmem %s14, %s1922
        // Predicated region
        $region100: #{tpu_custom_call.1} parent=75 // pred_check
          %p1924 = pneg %p345
        $region101: #{tpu_custom_call.1} parent=75 // pred_check_branch
          %1926 = sbr.rel (%p1924) target = $region103
        $region102: #{tpu_custom_call.1} parent=75 // pred_region
          %s1927 = smul.u32 4, %s28
        $region103: #{tpu_custom_call.1} parent=75 // pred_fallthru
          _
      $region76: #{tpu_custom_call.1} parent=5 // pred_fallthru
        _
      %p1928 = scmp.le.s32.totalorder 2, %s23
      // Predicated region
      $region104: #{tpu_custom_call.1} parent=5 // pred_check
        %p1929 = pneg %p1928
      $region105: #{tpu_custom_call.1} parent=5 // pred_check_branch
        %1931 = sbr.rel (%p1929) target = $region107
      $region106: #{tpu_custom_call.1} parent=5 // pred_region
        %s1932 = ssub.s32 %s23, 2
        // Predicated region
        $region108: #{tpu_custom_call.1} parent=106 // pred_check
          %p1933 = pneg %p351
        $region109: #{tpu_custom_call.1} parent=106 // pred_check_branch
          %1935 = sbr.rel (%p1933) target = $region111
        $region110: #{tpu_custom_call.1} parent=106 // pred_region
          %s1936 = smul.u32 4, %s29
          %p1937 = scmp.lt.s32.totalorder %s1936, 7
          %s1938 = scalar_select %p1937, %s1936, 7
          %s1939 = smul.addr %s1938, 8
          %s1940 = scalar_lea.vmem %s14, %s1939
        $region111: #{tpu_custom_call.1} parent=106 // pred_fallthru
          _
      $region107: #{tpu_custom_call.1} parent=5 // pred_fallthru
        _
    $region6: #{tpu_custom_call.1} parent=1 // loop_footer
      %s27 = sadd.s32 1, %s23
    $region7: #{tpu_custom_call.1} parent=1 // loop_footer_branch
      %22 = sbr.rel target = $region3
    $region8: #{tpu_custom_call.1} parent=1 // loop_exit
      _
    %1941 = vsyncpa [#allocation4], 1
    %s1942 = scalar_lea.sflag [#allocation4], 1
    %1943 = vsyncpa %s1942, 1
    %1944 = vsyncpa [#allocation6], 1
    %1945 = vsyncpa [#allocation9], 1

</llo_original>
